<compile_context>
chip_gen: v6e
topology: v6e:2x2x1
jax: 0.10.0
libtpu: 0.0.40
codegen_flags: <defaults>
</compile_context>

<pallas_src>
import jax
import jax.numpy as jnp
from jax.experimental import pallas as pl
from jax.experimental.pallas import tpu as pltpu

# ----------------------------- config (small demo shapes) --------------------
BATCH = 2
SEQ = 8
INPUT_CHANNELS = 4
HIDDEN = 32
NUM_LAYERS = 2
NUM_DIRECTIONS = 2

H = HIDDEN
H2, H4, H6 = 2 * H, 4 * H, 6 * H          # 64, 128, 192 lanes
BP = 8                                     # padded batch rows per block (f32 sublane tile)
TB = SEQ * BP                              # rows of time-major, batch-padded slabs


# ----------------------------- fused kernel ----------------------------------
def _bidir_gru_loop(gi_all, w_hh, ghb_row, h0, store_fn=None):
    """T unrolled steps of a fused (forward + backward) GRU layer.

    gi_all : (T*BP, 6H) precomputed input-side gates, step-indexed:
             row-block s holds gates in [r_f r_b | z_f z_b | n_f n_b] lane order,
             fwd columns computed from input time s, bwd columns from time T-1-s.
             b_ih and b_hh(r,z) are already folded in.
    w_hh   : (2H, 6H) block recurrent weights acting on the h = [h_fwd | h_bwd] slab.
    ghb_row: (1, 2H) n-gate hidden bias [b_hn_fwd | b_hn_bwd] (must stay inside r*(...)).
    """
    ghb = jnp.broadcast_to(ghb_row, (BP, H2))      # hoisted: one broadcast per layer
    h = h0
    for s in range(SEQ):                           # static unroll, T = 8
        gi_s = gi_all[s * BP:(s + 1) * BP, :]      # (BP, 6H) full sublane-tile slice
        gh = jnp.dot(h, w_hh, preferred_element_type=jnp.float32)        # (BP, 6H)
        grz = jax.nn.sigmoid(gi_s[:, 0:H4] + gh[:, 0:H4])   # one 128-lane sigmoid slab
        r = grz[:, 0:H2]                           # lanes 0:63  (no rotate)
        z = grz[:, H2:H4]                          # lanes 64:127 (one lane shift / step)
        n = jnp.tanh(gi_s[:, H4:H6] + r * (gh[:, H4:H6] + ghb))          # 64-lane tanh
        h = n + z * (h - n)                        # == (1 - z) * n + z * h
        if store_fn is not None:
            store_fn(s, h)
    return h                                       # [h_fwd_final | h_bwd_final]


def discriminator_kernel(x_ref,
                         w0_ref, gib0_ref, whh0_ref, ghb0_ref,
                         w1a_ref, w1b_ref, gib1_ref, whh1_ref, ghb1_ref,
                         dw_ref, db_ref,
                         out_ref,
                         ya_ref, yb_ref):
    """Fused forward for one batch block of 8 (padded) sequences.

    x_ref : (T*BP, 2C)  time-major, row-block s = [x(s) | x(T-1-s)] channels.
    w0    : (2C, 6H)    layer-0 packed input weights (both directions, one GEMM).
    w1a/b : (2H, 6H)    layer-1 packed input weights acting on Ya / Yb scratch.
    gib*  : (1, 6H)     b_ih + b_hh(r,z) folded biases.
    whh*  : (2H, 6H)    block recurrent weights.
    ghb*  : (1, 2H)     n-gate hidden bias only.
    dw/db : (1, 2H)/(1, 1) dense head.
    out   : (BP, 128)   lane-dense padded output slab (column 0 = logit).
    ya/yb : (T*BP, 2H)  VMEM scratch holding layer-0 output slabs (Yb time-mirrored).
    """
    # ---- layer 0: ONE GEMM for all input-side gates of the whole sequence ----
    gi0 = jnp.dot(x_ref[...], w0_ref[...],
                  preferred_element_type=jnp.float32) + gib0_ref[...]

    def store0(s, h_slab):
        # h_slab = [h0_fwd(s) | h0_bwd(T-1-s)]
        ya_ref[s * BP:(s + 1) * BP, :] = h_slab                 # Ya[s]     = slab(s)
        yb_ref[(SEQ - 1 - s) * BP:(SEQ - s) * BP, :] = h_slab   # Yb[T-1-s] = slab(s)

    h_init = jnp.zeros((BP, H2), jnp.float32)
    _bidir_gru_loop(gi0, whh0_ref[...], ghb0_ref[...], h_init, store_fn=store0)

    # ---- layer 1: gates from two scratch GEMMs (no concat chain, no reversal) ----
    gi1 = (jnp.dot(ya_ref[...], w1a_ref[...], preferred_element_type=jnp.float32)
           + jnp.dot(yb_ref[...], w1b_ref[...], preferred_element_type=jnp.float32)
           + gib1_ref[...])
    hN = _bidir_gru_loop(gi1, whh1_ref[...], ghb1_ref[...], h_init)

    # ---- dense head: VPU multiply + lane reduce (avoid N=1 MXU matmul) ------
    # nn.Tanh() is defined in the torch module but never applied in forward().
    logit = jnp.sum(hN * dw_ref[...], axis=-1, keepdims=True) + db_ref[...]
    out_ref[...] = jnp.broadcast_to(logit, (BP, 128))           # lane-dense store


# ----------------------------- parameter init --------------------------------
def init_params(key, input_channels, hidden, num_layers, num_directions):
    params = {}
    bound = 1.0 / jnp.sqrt(hidden)
    for layer in range(num_layers):
        d_in = input_channels if layer == 0 else hidden * num_directions
        for d in range(num_directions):
            key, k1, k2, k3, k4 = jax.random.split(key, 5)
            params[f"l{layer}_d{d}"] = dict(
                w_ih=jax.random.uniform(k1, (3, d_in, hidden), jnp.float32, -bound, bound),
                w_hh=jax.random.uniform(k2, (3, hidden, hidden), jnp.float32, -bound, bound),
                b_ih=jax.random.uniform(k3, (3, 1, hidden), jnp.float32, -bound, bound),
                b_hh=jax.random.uniform(k4, (3, 1, hidden), jnp.float32, -bound, bound),
            )
    key, k1, k2 = jax.random.split(key, 3)
    fan_in = hidden * num_directions
    dbound = 1.0 / jnp.sqrt(fan_in)
    params["dense_w"] = jax.random.uniform(k1, (fan_in, 1), jnp.float32, -dbound, dbound)
    params["dense_b"] = jax.random.uniform(k2, (1, 1), jnp.float32, -dbound, dbound)
    return params


# ----------------------------- packing to kernel layout ----------------------
def pack_params(params):
    """PyTorch-style per-gate weights -> lane-aligned fused layout.

    Gate column order everywhere: [r_f r_b | z_f z_b | n_f n_b] (each block H lanes).
    """
    C = INPUT_CHANNELS
    zC = jnp.zeros((C, H), jnp.float32)
    zH = jnp.zeros((H, H), jnp.float32)

    def rows(top, bot):
        return jnp.concatenate([top, bot], axis=0)

    def pack_hh(pf, pb):
        cols = []
        for g in range(3):
            cols.append(rows(pf["w_hh"][g], zH))    # gate_fwd col, fed by h_fwd rows
            cols.append(rows(zH, pb["w_hh"][g]))    # gate_bwd col, fed by h_bwd rows
        return jnp.concatenate(cols, axis=1)        # (2H, 6H)

    def pack_gib(pf, pb):
        return jnp.concatenate([
            pf["b_ih"][0] + pf["b_hh"][0], pb["b_ih"][0] + pb["b_hh"][0],
            pf["b_ih"][1] + pf["b_hh"][1], pb["b_ih"][1] + pb["b_hh"][1],
            pf["b_ih"][2],                 pb["b_ih"][2],
        ], axis=1)                                  # (1, 6H)

    def pack_ghb(pf, pb):
        return jnp.concatenate([pf["b_hh"][2], pb["b_hh"][2]], axis=1)   # (1, 2H)

    # ---- layer 0: input row blocks are [x(t) (C rows) | x(T-1-t) (C rows)] ----
    pf, pb = params["l0_d0"], params["l0_d1"]
    cols = []
    for g in range(3):
        cols.append(rows(pf["w_ih"][g], zC))        # fwd gate col <- x(t)
        cols.append(rows(zC, pb["w_ih"][g]))        # bwd gate col <- x(T-1-t)
    l0 = dict(w_in=jnp.concatenate(cols, axis=1),   # (2C, 6H)
              gib=pack_gib(pf, pb), w_hh=pack_hh(pf, pb), ghb=pack_ghb(pf, pb))

    # ---- layer 1: Ya[s] = [h0_fwd(s) | h0_bwd(T-1-s)], Yb[s] = Ya[T-1-s] ------
    pf, pb = params["l1_d0"], params["l1_d1"]
    a_cols, b_cols = [], []
    for g in range(3):
        wf, wb = pf["w_ih"][g], pb["w_ih"][g]       # (2H, H): rows 0:H fwd-part, H:2H bwd-part
        # forward-direction gate column (consumes layer-0 output at time s):
        a_cols.append(rows(wf[0:H], zH))            # h0_fwd(s)     lives in Ya[:, 0:H]
        b_cols.append(rows(zH, wf[H:2 * H]))        # h0_bwd(s)     lives in Yb[:, H:2H]
        # backward-direction gate column (consumes layer-0 output at time T-1-s):
        a_cols.append(rows(zH, wb[H:2 * H]))        # h0_bwd(T-1-s) lives in Ya[:, H:2H]
        b_cols.append(rows(wb[0:H], zH))            # h0_fwd(T-1-s) lives in Yb[:, 0:H]
    l1 = dict(w_in_a=jnp.concatenate(a_cols, axis=1),   # (2H, 6H)
              w_in_b=jnp.concatenate(b_cols, axis=1),   # (2H, 6H)
              gib=pack_gib(pf, pb), w_hh=pack_hh(pf, pb), ghb=pack_ghb(pf, pb))

    return dict(l0=l0, l1=l1,
                dense_w=params["dense_w"].reshape(1, 2 * H),
                dense_b=params["dense_b"])


# ----------------------------- forward wrapper --------------------------------
@jax.jit
def discriminator_forward(x_btc, packed):
    """x_btc: (B, T, C) batch_first like the PyTorch module.  Returns (B, 1)."""
    B, T, C = x_btc.shape
    NB = (B + BP - 1) // BP
    Bp = NB * BP

    x32 = x_btc.astype(jnp.float32)
    xp = jnp.zeros((Bp, T, C), jnp.float32).at[:B].set(x32)
    # Combined [x(t) | x(T-1-t)] channels: ONE GEMM yields both directions' gates.
    xc = jnp.concatenate([xp, xp[:, ::-1, :]], axis=-1)                  # (Bp, T, 2C)
    xc = xc.reshape(NB, BP, T, 2 * C).transpose(0, 2, 1, 3).reshape(NB, T * BP, 2 * C)

    def resident(arr):                     # weights stay VMEM-resident across the grid
        nd = arr.ndim
        return pl.BlockSpec(arr.shape, lambda i, _nd=nd: (0,) * _nd)

    l0, l1 = packed["l0"], packed["l1"]
    weights = (l0["w_in"], l0["gib"], l0["w_hh"], l0["ghb"],
               l1["w_in_a"], l1["w_in_b"], l1["gib"], l1["w_hh"], l1["ghb"],
               packed["dense_w"], packed["dense_b"])

    out = pl.pallas_call(
        discriminator_kernel,
        out_shape=jax.ShapeDtypeStruct((NB, BP, 128), jnp.float32),
        grid_spec=pltpu.PrefetchScalarGridSpec(
            num_scalar_prefetch=0,
            grid=(NB,),
            in_specs=[pl.BlockSpec((None, T * BP, 2 * C), lambda i: (i, 0, 0))]
                     + [resident(w) for w in weights],
            out_specs=pl.BlockSpec((None, BP, 128), lambda i: (i, 0, 0)),
            scratch_shapes=[pltpu.VMEM((T * BP, 2 * H), jnp.float32),
                            pltpu.VMEM((T * BP, 2 * H), jnp.float32)],
        ),
        compiler_params=pltpu.CompilerParams(
            dimension_semantics=("parallel",)),
    )(xc, *weights)

    return out.reshape(NB * BP, 128)[:B, 0:1]


# ----------------------------- pure-JAX reference (sanity) --------------------
def _gru_layer_ref(x_tbd, w_ih, w_hh, b_ih, b_hh):
    Hd = w_hh.shape[-1]

    def step(h, x_t):
        gi = jnp.stack([x_t @ w_ih[g] + b_ih[g] for g in range(3)])
        gh = jnp.stack([h @ w_hh[g] + b_hh[g] for g in range(3)])
        r = jax.nn.sigmoid(gi[0] + gh[0])
        z = jax.nn.sigmoid(gi[1] + gh[1])
        n = jnp.tanh(gi[2] + r * gh[2])
        h_new = (1.0 - z) * n + z * h
        return h_new, h_new

    h0 = jnp.zeros((x_tbd.shape[1], Hd), jnp.float32)
    h_fin, out = jax.lax.scan(step, h0, x_tbd)
    return out, h_fin


def _forward_ref(x_btc, params):
    x_tbd = jnp.transpose(x_btc, (1, 0, 2)).astype(jnp.float32)
    layer_in = x_tbd
    final_h = {}
    for layer in range(NUM_LAYERS):
        dir_outs = []
        for d in range(NUM_DIRECTIONS):
            xin = layer_in if d == 0 else layer_in[::-1]
            p = params[f"l{layer}_d{d}"]
            out_seq, h_fin = _gru_layer_ref(xin, p["w_ih"], p["w_hh"], p["b_ih"], p["b_hh"])
            if d == 1:
                out_seq = out_seq[::-1]
            dir_outs.append(out_seq)
            final_h[(layer, d)] = h_fin
        layer_in = jnp.concatenate(dir_outs, axis=-1)
    X = jnp.concatenate([final_h[(NUM_LAYERS - 1, 0)],
                         final_h[(NUM_LAYERS - 1, 1)]], axis=-1)
    return X @ params["dense_w"] + params["dense_b"]


# ----------------------------- main -------------------------------------------
if __name__ == "__main__":
    key = jax.random.PRNGKey(0)
    k_params, k_x = jax.random.split(key)
    params = init_params(k_params, INPUT_CHANNELS, HIDDEN, NUM_LAYERS, NUM_DIRECTIONS)
    packed = pack_params(params)
    x = jax.random.normal(k_x, (BATCH, SEQ, INPUT_CHANNELS), jnp.float32)

    out = discriminator_forward(x, packed)
    out = jax.block_until_ready(out)
    assert out.shape == (BATCH, 1), out.shape

    ref = jax.block_until_ready(_forward_ref(x, params))
    if not jnp.allclose(out, ref, atol=1e-3, rtol=1e-3):
        raise RuntimeError(f"mismatch vs reference: {out} vs {ref}")

    print("KERNEL_OK")
</pallas_src>

<mosaic_0001>
module attributes {stable_mosaic.version = 11 : i64} {
  func.func @discriminator_kernel(%arg0: i32, %arg1: memref<1x64x8xf32, #tpu.memory_space<vmem>>, %arg2: memref<8x192xf32, #tpu.memory_space<vmem>>, %arg3: memref<1x192xf32, #tpu.memory_space<vmem>>, %arg4: memref<64x192xf32, #tpu.memory_space<vmem>>, %arg5: memref<1x64xf32, #tpu.memory_space<vmem>>, %arg6: memref<64x192xf32, #tpu.memory_space<vmem>>, %arg7: memref<64x192xf32, #tpu.memory_space<vmem>>, %arg8: memref<1x192xf32, #tpu.memory_space<vmem>>, %arg9: memref<64x192xf32, #tpu.memory_space<vmem>>, %arg10: memref<1x64xf32, #tpu.memory_space<vmem>>, %arg11: memref<1x64xf32, #tpu.memory_space<vmem>>, %arg12: memref<1x1xf32, #tpu.memory_space<vmem>>, %arg13: memref<1x8x128xf32, #tpu.memory_space<vmem>>, %arg14: memref<64x64xf32, #tpu.memory_space<vmem>>, %arg15: memref<64x64xf32, #tpu.memory_space<vmem>>) attributes {dimension_semantics = [#tpu.dimension_semantics<parallel>], iteration_bounds = array<i64: 1>, scalar_prefetch = 0 : i64, scratch_operands = 2 : i64, tpu.core_type = #tpu.core_type<tc>, window_params = [{transform_indices = @transform_0, window_bounds = array<i64: 1, 64, 8>}, {pipeline_mode = #tpu.pipeline_mode<synchronous>, transform_indices = @transform_1, window_bounds = array<i64: 8, 192>}, {pipeline_mode = #tpu.pipeline_mode<synchronous>, transform_indices = @transform_2, window_bounds = array<i64: 1, 192>}, {pipeline_mode = #tpu.pipeline_mode<synchronous>, transform_indices = @transform_3, window_bounds = array<i64: 64, 192>}, {pipeline_mode = #tpu.pipeline_mode<synchronous>, transform_indices = @transform_4, window_bounds = array<i64: 1, 64>}, {pipeline_mode = #tpu.pipeline_mode<synchronous>, transform_indices = @transform_5, window_bounds = array<i64: 64, 192>}, {pipeline_mode = #tpu.pipeline_mode<synchronous>, transform_indices = @transform_6, window_bounds = array<i64: 64, 192>}, {pipeline_mode = #tpu.pipeline_mode<synchronous>, transform_indices = @transform_7, window_bounds = array<i64: 1, 192>}, {pipeline_mode = #tpu.pipeline_mode<synchronous>, transform_indices = @transform_8, window_bounds = array<i64: 64, 192>}, {pipeline_mode = #tpu.pipeline_mode<synchronous>, transform_indices = @transform_9, window_bounds = array<i64: 1, 64>}, {pipeline_mode = #tpu.pipeline_mode<synchronous>, transform_indices = @transform_10, window_bounds = array<i64: 1, 64>}, {pipeline_mode = #tpu.pipeline_mode<synchronous>, transform_indices = @transform_11, window_bounds = array<i64: 1, 1>}, {transform_indices = @transform_12, window_bounds = array<i64: 1, 8, 128>}]} {
    %c0 = arith.constant 0 : index
    %c0_0 = arith.constant 0 : index
    %c0_1 = arith.constant 0 : index
    %0 = vector.load %arg1[%c0, %c0_0, %c0_1] : memref<1x64x8xf32, #tpu.memory_space<vmem>>, vector<1x64x8xf32>
    %1 = vector.shape_cast %0 : vector<1x64x8xf32> to vector<64x8xf32>
    %c0_2 = arith.constant 0 : index
    %c0_3 = arith.constant 0 : index
    %2 = vector.load %arg2[%c0_2, %c0_3] : memref<8x192xf32, #tpu.memory_space<vmem>>, vector<8x192xf32>
    %cst = arith.constant dense<0.000000e+00> : vector<64x192xf32>
    %3 = tpu.matmul %1, %2, %cst {dimension_numbers = #tpu.dot_dimension_numbers<[1], [0], [0], [1], [0, 0, 1, 1], [], []>} : vector<64x8xf32>, vector<8x192xf32>, vector<64x192xf32> -> vector<64x192xf32>
    %c0_4 = arith.constant 0 : index
    %c0_5 = arith.constant 0 : index
    %4 = vector.load %arg3[%c0_4, %c0_5] : memref<1x192xf32, #tpu.memory_space<vmem>>, vector<1x192xf32>
    %5 = vector.broadcast %4 : vector<1x192xf32> to vector<64x192xf32>
    %6 = arith.addf %3, %5 : vector<64x192xf32>
    %cst_6 = arith.constant 0.000000e+00 : f32
    %7 = vector.broadcast %cst_6 : f32 to vector<8x64xf32>
    %c0_7 = arith.constant 0 : index
    %c0_8 = arith.constant 0 : index
    %8 = vector.load %arg4[%c0_7, %c0_8] : memref<64x192xf32, #tpu.memory_space<vmem>>, vector<64x192xf32>
    %c0_9 = arith.constant 0 : index
    %c0_10 = arith.constant 0 : index
    %9 = vector.load %arg5[%c0_9, %c0_10] : memref<1x64xf32, #tpu.memory_space<vmem>>, vector<1x64xf32>
    %10 = vector.shape_cast %9 : vector<1x64xf32> to vector<1x64xf32>
    %11 = vector.broadcast %10 : vector<1x64xf32> to vector<8x64xf32>
    %12 = vector.extract_strided_slice %6 {offsets = [0, 0], sizes = [8, 192], strides = [1, 1]} : vector<64x192xf32> to vector<8x192xf32>
    %cst_11 = arith.constant dense<0.000000e+00> : vector<8x192xf32>
    %13 = tpu.matmul %7, %8, %cst_11 {dimension_numbers = #tpu.dot_dimension_numbers<[1], [0], [0], [1], [0, 0, 1, 1], [], []>} : vector<8x64xf32>, vector<64x192xf32>, vector<8x192xf32> -> vector<8x192xf32>
    %14 = vector.extract_strided_slice %12 {offsets = [0, 0], sizes = [8, 128], strides = [1, 1]} : vector<8x192xf32> to vector<8x128xf32>
    %15 = vector.extract_strided_slice %13 {offsets = [0, 0], sizes = [8, 128], strides = [1, 1]} : vector<8x192xf32> to vector<8x128xf32>
    %16 = arith.addf %14, %15 : vector<8x128xf32>
    %17 = arith.negf %16 : vector<8x128xf32>
    %18 = math.exp %17 : vector<8x128xf32>
    %cst_12 = arith.constant 1.000000e+00 : f32
    %19 = vector.broadcast %cst_12 : f32 to vector<8x128xf32>
    %20 = arith.addf %19, %18 : vector<8x128xf32>
    %21 = arith.divf %19, %20 : vector<8x128xf32>
    %22 = vector.extract_strided_slice %21 {offsets = [0, 0], sizes = [8, 64], strides = [1, 1]} : vector<8x128xf32> to vector<8x64xf32>
    %23 = vector.extract_strided_slice %21 {offsets = [0, 64], sizes = [8, 64], strides = [1, 1]} : vector<8x128xf32> to vector<8x64xf32>
    %24 = vector.extract_strided_slice %12 {offsets = [0, 128], sizes = [8, 64], strides = [1, 1]} : vector<8x192xf32> to vector<8x64xf32>
    %25 = vector.extract_strided_slice %13 {offsets = [0, 128], sizes = [8, 64], strides = [1, 1]} : vector<8x192xf32> to vector<8x64xf32>
    %26 = arith.addf %25, %11 : vector<8x64xf32>
    %27 = arith.mulf %22, %26 : vector<8x64xf32>
    %28 = arith.addf %24, %27 : vector<8x64xf32>
    %29 = math.tanh %28 : vector<8x64xf32>
    %30 = arith.subf %7, %29 : vector<8x64xf32>
    %31 = arith.mulf %23, %30 : vector<8x64xf32>
    %32 = arith.addf %29, %31 : vector<8x64xf32>
    %c0_13 = arith.constant 0 : index
    %c0_14 = arith.constant 0 : index
    %33 = vector.load %arg14[%c0_13, %c0_14] : memref<64x64xf32, #tpu.memory_space<vmem>>, vector<8x64xf32>
    tpu.vector_store %arg14[%c0_13, %c0_14], %32 {strides = array<i32>} : memref<64x64xf32, #tpu.memory_space<vmem>>, vector<8x64xf32>,
    %c56 = arith.constant 56 : index
    %c0_15 = arith.constant 0 : index
    %34 = vector.load %arg15[%c56, %c0_15] : memref<64x64xf32, #tpu.memory_space<vmem>>, vector<8x64xf32>
    tpu.vector_store %arg15[%c56, %c0_15], %32 {strides = array<i32>} : memref<64x64xf32, #tpu.memory_space<vmem>>, vector<8x64xf32>,
    %35 = vector.extract_strided_slice %6 {offsets = [8, 0], sizes = [8, 192], strides = [1, 1]} : vector<64x192xf32> to vector<8x192xf32>
    %cst_16 = arith.constant dense<0.000000e+00> : vector<8x192xf32>
    %36 = tpu.matmul %32, %8, %cst_16 {dimension_numbers = #tpu.dot_dimension_numbers<[1], [0], [0], [1], [0, 0, 1, 1], [], []>} : vector<8x64xf32>, vector<64x192xf32>, vector<8x192xf32> -> vector<8x192xf32>
    %37 = vector.extract_strided_slice %35 {offsets = [0, 0], sizes = [8, 128], strides = [1, 1]} : vector<8x192xf32> to vector<8x128xf32>
    %38 = vector.extract_strided_slice %36 {offsets = [0, 0], sizes = [8, 128], strides = [1, 1]} : vector<8x192xf32> to vector<8x128xf32>
    %39 = arith.addf %37, %38 : vector<8x128xf32>
    %40 = arith.negf %39 : vector<8x128xf32>
    %41 = math.exp %40 : vector<8x128xf32>
    %cst_17 = arith.constant 1.000000e+00 : f32
    %42 = vector.broadcast %cst_17 : f32 to vector<8x128xf32>
    %43 = arith.addf %42, %41 : vector<8x128xf32>
    %44 = arith.divf %42, %43 : vector<8x128xf32>
    %45 = vector.extract_strided_slice %44 {offsets = [0, 0], sizes = [8, 64], strides = [1, 1]} : vector<8x128xf32> to vector<8x64xf32>
    %46 = vector.extract_strided_slice %44 {offsets = [0, 64], sizes = [8, 64], strides = [1, 1]} : vector<8x128xf32> to vector<8x64xf32>
    %47 = vector.extract_strided_slice %35 {offsets = [0, 128], sizes = [8, 64], strides = [1, 1]} : vector<8x192xf32> to vector<8x64xf32>
    %48 = vector.extract_strided_slice %36 {offsets = [0, 128], sizes = [8, 64], strides = [1, 1]} : vector<8x192xf32> to vector<8x64xf32>
    %49 = arith.addf %48, %11 : vector<8x64xf32>
    %50 = arith.mulf %45, %49 : vector<8x64xf32>
    %51 = arith.addf %47, %50 : vector<8x64xf32>
    %52 = math.tanh %51 : vector<8x64xf32>
    %53 = arith.subf %32, %52 : vector<8x64xf32>
    %54 = arith.mulf %46, %53 : vector<8x64xf32>
    %55 = arith.addf %52, %54 : vector<8x64xf32>
    %c8 = arith.constant 8 : index
    %c0_18 = arith.constant 0 : index
    %56 = vector.load %arg14[%c8, %c0_18] : memref<64x64xf32, #tpu.memory_space<vmem>>, vector<8x64xf32>
    tpu.vector_store %arg14[%c8, %c0_18], %55 {strides = array<i32>} : memref<64x64xf32, #tpu.memory_space<vmem>>, vector<8x64xf32>,
    %c48 = arith.constant 48 : index
    %c0_19 = arith.constant 0 : index
    %57 = vector.load %arg15[%c48, %c0_19] : memref<64x64xf32, #tpu.memory_space<vmem>>, vector<8x64xf32>
    tpu.vector_store %arg15[%c48, %c0_19], %55 {strides = array<i32>} : memref<64x64xf32, #tpu.memory_space<vmem>>, vector<8x64xf32>,
    %58 = vector.extract_strided_slice %6 {offsets = [16, 0], sizes = [8, 192], strides = [1, 1]} : vector<64x192xf32> to vector<8x192xf32>
    %cst_20 = arith.constant dense<0.000000e+00> : vector<8x192xf32>
    %59 = tpu.matmul %55, %8, %cst_20 {dimension_numbers = #tpu.dot_dimension_numbers<[1], [0], [0], [1], [0, 0, 1, 1], [], []>} : vector<8x64xf32>, vector<64x192xf32>, vector<8x192xf32> -> vector<8x192xf32>
    %60 = vector.extract_strided_slice %58 {offsets = [0, 0], sizes = [8, 128], strides = [1, 1]} : vector<8x192xf32> to vector<8x128xf32>
    %61 = vector.extract_strided_slice %59 {offsets = [0, 0], sizes = [8, 128], strides = [1, 1]} : vector<8x192xf32> to vector<8x128xf32>
    %62 = arith.addf %60, %61 : vector<8x128xf32>
    %63 = arith.negf %62 : vector<8x128xf32>
    %64 = math.exp %63 : vector<8x128xf32>
    %cst_21 = arith.constant 1.000000e+00 : f32
    %65 = vector.broadcast %cst_21 : f32 to vector<8x128xf32>
    %66 = arith.addf %65, %64 : vector<8x128xf32>
    %67 = arith.divf %65, %66 : vector<8x128xf32>
    %68 = vector.extract_strided_slice %67 {offsets = [0, 0], sizes = [8, 64], strides = [1, 1]} : vector<8x128xf32> to vector<8x64xf32>
    %69 = vector.extract_strided_slice %67 {offsets = [0, 64], sizes = [8, 64], strides = [1, 1]} : vector<8x128xf32> to vector<8x64xf32>
    %70 = vector.extract_strided_slice %58 {offsets = [0, 128], sizes = [8, 64], strides = [1, 1]} : vector<8x192xf32> to vector<8x64xf32>
    %71 = vector.extract_strided_slice %59 {offsets = [0, 128], sizes = [8, 64], strides = [1, 1]} : vector<8x192xf32> to vector<8x64xf32>
    %72 = arith.addf %71, %11 : vector<8x64xf32>
    %73 = arith.mulf %68, %72 : vector<8x64xf32>
    %74 = arith.addf %70, %73 : vector<8x64xf32>
    %75 = math.tanh %74 : vector<8x64xf32>
    %76 = arith.subf %55, %75 : vector<8x64xf32>
    %77 = arith.mulf %69, %76 : vector<8x64xf32>
    %78 = arith.addf %75, %77 : vector<8x64xf32>
    %c16 = arith.constant 16 : index
    %c0_22 = arith.constant 0 : index
    %79 = vector.load %arg14[%c16, %c0_22] : memref<64x64xf32, #tpu.memory_space<vmem>>, vector<8x64xf32>
    tpu.vector_store %arg14[%c16, %c0_22], %78 {strides = array<i32>} : memref<64x64xf32, #tpu.memory_space<vmem>>, vector<8x64xf32>,
    %c40 = arith.constant 40 : index
    %c0_23 = arith.constant 0 : index
    %80 = vector.load %arg15[%c40, %c0_23] : memref<64x64xf32, #tpu.memory_space<vmem>>, vector<8x64xf32>
    tpu.vector_store %arg15[%c40, %c0_23], %78 {strides = array<i32>} : memref<64x64xf32, #tpu.memory_space<vmem>>, vector<8x64xf32>,
    %81 = vector.extract_strided_slice %6 {offsets = [24, 0], sizes = [8, 192], strides = [1, 1]} : vector<64x192xf32> to vector<8x192xf32>
    %cst_24 = arith.constant dense<0.000000e+00> : vector<8x192xf32>
    %82 = tpu.matmul %78, %8, %cst_24 {dimension_numbers = #tpu.dot_dimension_numbers<[1], [0], [0], [1], [0, 0, 1, 1], [], []>} : vector<8x64xf32>, vector<64x192xf32>, vector<8x192xf32> -> vector<8x192xf32>
    %83 = vector.extract_strided_slice %81 {offsets = [0, 0], sizes = [8, 128], strides = [1, 1]} : vector<8x192xf32> to vector<8x128xf32>
    %84 = vector.extract_strided_slice %82 {offsets = [0, 0], sizes = [8, 128], strides = [1, 1]} : vector<8x192xf32> to vector<8x128xf32>
    %85 = arith.addf %83, %84 : vector<8x128xf32>
    %86 = arith.negf %85 : vector<8x128xf32>
    %87 = math.exp %86 : vector<8x128xf32>
    %cst_25 = arith.constant 1.000000e+00 : f32
    %88 = vector.broadcast %cst_25 : f32 to vector<8x128xf32>
    %89 = arith.addf %88, %87 : vector<8x128xf32>
    %90 = arith.divf %88, %89 : vector<8x128xf32>
    %91 = vector.extract_strided_slice %90 {offsets = [0, 0], sizes = [8, 64], strides = [1, 1]} : vector<8x128xf32> to vector<8x64xf32>
    %92 = vector.extract_strided_slice %90 {offsets = [0, 64], sizes = [8, 64], strides = [1, 1]} : vector<8x128xf32> to vector<8x64xf32>
    %93 = vector.extract_strided_slice %81 {offsets = [0, 128], sizes = [8, 64], strides = [1, 1]} : vector<8x192xf32> to vector<8x64xf32>
    %94 = vector.extract_strided_slice %82 {offsets = [0, 128], sizes = [8, 64], strides = [1, 1]} : vector<8x192xf32> to vector<8x64xf32>
    %95 = arith.addf %94, %11 : vector<8x64xf32>
    %96 = arith.mulf %91, %95 : vector<8x64xf32>
    %97 = arith.addf %93, %96 : vector<8x64xf32>
    %98 = math.tanh %97 : vector<8x64xf32>
    %99 = arith.subf %78, %98 : vector<8x64xf32>
    %100 = arith.mulf %92, %99 : vector<8x64xf32>
    %101 = arith.addf %98, %100 : vector<8x64xf32>
    %c24 = arith.constant 24 : index
    %c0_26 = arith.constant 0 : index
    %102 = vector.load %arg14[%c24, %c0_26] : memref<64x64xf32, #tpu.memory_space<vmem>>, vector<8x64xf32>
    tpu.vector_store %arg14[%c24, %c0_26], %101 {strides = array<i32>} : memref<64x64xf32, #tpu.memory_space<vmem>>, vector<8x64xf32>,
    %c32 = arith.constant 32 : index
    %c0_27 = arith.constant 0 : index
    %103 = vector.load %arg15[%c32, %c0_27] : memref<64x64xf32, #tpu.memory_space<vmem>>, vector<8x64xf32>
    tpu.vector_store %arg15[%c32, %c0_27], %101 {strides = array<i32>} : memref<64x64xf32, #tpu.memory_space<vmem>>, vector<8x64xf32>,
    %104 = vector.extract_strided_slice %6 {offsets = [32, 0], sizes = [8, 192], strides = [1, 1]} : vector<64x192xf32> to vector<8x192xf32>
    %cst_28 = arith.constant dense<0.000000e+00> : vector<8x192xf32>
    %105 = tpu.matmul %101, %8, %cst_28 {dimension_numbers = #tpu.dot_dimension_numbers<[1], [0], [0], [1], [0, 0, 1, 1], [], []>} : vector<8x64xf32>, vector<64x192xf32>, vector<8x192xf32> -> vector<8x192xf32>
    %106 = vector.extract_strided_slice %104 {offsets = [0, 0], sizes = [8, 128], strides = [1, 1]} : vector<8x192xf32> to vector<8x128xf32>
    %107 = vector.extract_strided_slice %105 {offsets = [0, 0], sizes = [8, 128], strides = [1, 1]} : vector<8x192xf32> to vector<8x128xf32>
    %108 = arith.addf %106, %107 : vector<8x128xf32>
    %109 = arith.negf %108 : vector<8x128xf32>
    %110 = math.exp %109 : vector<8x128xf32>
    %cst_29 = arith.constant 1.000000e+00 : f32
    %111 = vector.broadcast %cst_29 : f32 to vector<8x128xf32>
    %112 = arith.addf %111, %110 : vector<8x128xf32>
    %113 = arith.divf %111, %112 : vector<8x128xf32>
    %114 = vector.extract_strided_slice %113 {offsets = [0, 0], sizes = [8, 64], strides = [1, 1]} : vector<8x128xf32> to vector<8x64xf32>
    %115 = vector.extract_strided_slice %113 {offsets = [0, 64], sizes = [8, 64], strides = [1, 1]} : vector<8x128xf32> to vector<8x64xf32>
    %116 = vector.extract_strided_slice %104 {offsets = [0, 128], sizes = [8, 64], strides = [1, 1]} : vector<8x192xf32> to vector<8x64xf32>
    %117 = vector.extract_strided_slice %105 {offsets = [0, 128], sizes = [8, 64], strides = [1, 1]} : vector<8x192xf32> to vector<8x64xf32>
    %118 = arith.addf %117, %11 : vector<8x64xf32>
    %119 = arith.mulf %114, %118 : vector<8x64xf32>
    %120 = arith.addf %116, %119 : vector<8x64xf32>
    %121 = math.tanh %120 : vector<8x64xf32>
    %122 = arith.subf %101, %121 : vector<8x64xf32>
    %123 = arith.mulf %115, %122 : vector<8x64xf32>
    %124 = arith.addf %121, %123 : vector<8x64xf32>
    %c32_30 = arith.constant 32 : index
    %c0_31 = arith.constant 0 : index
    %125 = vector.load %arg14[%c32_30, %c0_31] : memref<64x64xf32, #tpu.memory_space<vmem>>, vector<8x64xf32>
    tpu.vector_store %arg14[%c32_30, %c0_31], %124 {strides = array<i32>} : memref<64x64xf32, #tpu.memory_space<vmem>>, vector<8x64xf32>,
    %c24_32 = arith.constant 24 : index
    %c0_33 = arith.constant 0 : index
    %126 = vector.load %arg15[%c24_32, %c0_33] : memref<64x64xf32, #tpu.memory_space<vmem>>, vector<8x64xf32>
    tpu.vector_store %arg15[%c24_32, %c0_33], %124 {strides = array<i32>} : memref<64x64xf32, #tpu.memory_space<vmem>>, vector<8x64xf32>,
    %127 = vector.extract_strided_slice %6 {offsets = [40, 0], sizes = [8, 192], strides = [1, 1]} : vector<64x192xf32> to vector<8x192xf32>
    %cst_34 = arith.constant dense<0.000000e+00> : vector<8x192xf32>
    %128 = tpu.matmul %124, %8, %cst_34 {dimension_numbers = #tpu.dot_dimension_numbers<[1], [0], [0], [1], [0, 0, 1, 1], [], []>} : vector<8x64xf32>, vector<64x192xf32>, vector<8x192xf32> -> vector<8x192xf32>
    %129 = vector.extract_strided_slice %127 {offsets = [0, 0], sizes = [8, 128], strides = [1, 1]} : vector<8x192xf32> to vector<8x128xf32>
    %130 = vector.extract_strided_slice %128 {offsets = [0, 0], sizes = [8, 128], strides = [1, 1]} : vector<8x192xf32> to vector<8x128xf32>
    %131 = arith.addf %129, %130 : vector<8x128xf32>
    %132 = arith.negf %131 : vector<8x128xf32>
    %133 = math.exp %132 : vector<8x128xf32>
    %cst_35 = arith.constant 1.000000e+00 : f32
    %134 = vector.broadcast %cst_35 : f32 to vector<8x128xf32>
    %135 = arith.addf %134, %133 : vector<8x128xf32>
    %136 = arith.divf %134, %135 : vector<8x128xf32>
    %137 = vector.extract_strided_slice %136 {offsets = [0, 0], sizes = [8, 64], strides = [1, 1]} : vector<8x128xf32> to vector<8x64xf32>
    %138 = vector.extract_strided_slice %136 {offsets = [0, 64], sizes = [8, 64], strides = [1, 1]} : vector<8x128xf32> to vector<8x64xf32>
    %139 = vector.extract_strided_slice %127 {offsets = [0, 128], sizes = [8, 64], strides = [1, 1]} : vector<8x192xf32> to vector<8x64xf32>
    %140 = vector.extract_strided_slice %128 {offsets = [0, 128], sizes = [8, 64], strides = [1, 1]} : vector<8x192xf32> to vector<8x64xf32>
    %141 = arith.addf %140, %11 : vector<8x64xf32>
    %142 = arith.mulf %137, %141 : vector<8x64xf32>
    %143 = arith.addf %139, %142 : vector<8x64xf32>
    %144 = math.tanh %143 : vector<8x64xf32>
    %145 = arith.subf %124, %144 : vector<8x64xf32>
    %146 = arith.mulf %138, %145 : vector<8x64xf32>
    %147 = arith.addf %144, %146 : vector<8x64xf32>
    %c40_36 = arith.constant 40 : index
    %c0_37 = arith.constant 0 : index
    %148 = vector.load %arg14[%c40_36, %c0_37] : memref<64x64xf32, #tpu.memory_space<vmem>>, vector<8x64xf32>
    tpu.vector_store %arg14[%c40_36, %c0_37], %147 {strides = array<i32>} : memref<64x64xf32, #tpu.memory_space<vmem>>, vector<8x64xf32>,
    %c16_38 = arith.constant 16 : index
    %c0_39 = arith.constant 0 : index
    %149 = vector.load %arg15[%c16_38, %c0_39] : memref<64x64xf32, #tpu.memory_space<vmem>>, vector<8x64xf32>
    tpu.vector_store %arg15[%c16_38, %c0_39], %147 {strides = array<i32>} : memref<64x64xf32, #tpu.memory_space<vmem>>, vector<8x64xf32>,
    %150 = vector.extract_strided_slice %6 {offsets = [48, 0], sizes = [8, 192], strides = [1, 1]} : vector<64x192xf32> to vector<8x192xf32>
    %cst_40 = arith.constant dense<0.000000e+00> : vector<8x192xf32>
    %151 = tpu.matmul %147, %8, %cst_40 {dimension_numbers = #tpu.dot_dimension_numbers<[1], [0], [0], [1], [0, 0, 1, 1], [], []>} : vector<8x64xf32>, vector<64x192xf32>, vector<8x192xf32> -> vector<8x192xf32>
    %152 = vector.extract_strided_slice %150 {offsets = [0, 0], sizes = [8, 128], strides = [1, 1]} : vector<8x192xf32> to vector<8x128xf32>
    %153 = vector.extract_strided_slice %151 {offsets = [0, 0], sizes = [8, 128], strides = [1, 1]} : vector<8x192xf32> to vector<8x128xf32>
    %154 = arith.addf %152, %153 : vector<8x128xf32>
    %155 = arith.negf %154 : vector<8x128xf32>
    %156 = math.exp %155 : vector<8x128xf32>
    %cst_41 = arith.constant 1.000000e+00 : f32
    %157 = vector.broadcast %cst_41 : f32 to vector<8x128xf32>
    %158 = arith.addf %157, %156 : vector<8x128xf32>
    %159 = arith.divf %157, %158 : vector<8x128xf32>
    %160 = vector.extract_strided_slice %159 {offsets = [0, 0], sizes = [8, 64], strides = [1, 1]} : vector<8x128xf32> to vector<8x64xf32>
    %161 = vector.extract_strided_slice %159 {offsets = [0, 64], sizes = [8, 64], strides = [1, 1]} : vector<8x128xf32> to vector<8x64xf32>
    %162 = vector.extract_strided_slice %150 {offsets = [0, 128], sizes = [8, 64], strides = [1, 1]} : vector<8x192xf32> to vector<8x64xf32>
    %163 = vector.extract_strided_slice %151 {offsets = [0, 128], sizes = [8, 64], strides = [1, 1]} : vector<8x192xf32> to vector<8x64xf32>
    %164 = arith.addf %163, %11 : vector<8x64xf32>
    %165 = arith.mulf %160, %164 : vector<8x64xf32>
    %166 = arith.addf %162, %165 : vector<8x64xf32>
    %167 = math.tanh %166 : vector<8x64xf32>
    %168 = arith.subf %147, %167 : vector<8x64xf32>
    %169 = arith.mulf %161, %168 : vector<8x64xf32>
    %170 = arith.addf %167, %169 : vector<8x64xf32>
    %c48_42 = arith.constant 48 : index
    %c0_43 = arith.constant 0 : index
    %171 = vector.load %arg14[%c48_42, %c0_43] : memref<64x64xf32, #tpu.memory_space<vmem>>, vector<8x64xf32>
    tpu.vector_store %arg14[%c48_42, %c0_43], %170 {strides = array<i32>} : memref<64x64xf32, #tpu.memory_space<vmem>>, vector<8x64xf32>,
    %c8_44 = arith.constant 8 : index
    %c0_45 = arith.constant 0 : index
    %172 = vector.load %arg15[%c8_44, %c0_45] : memref<64x64xf32, #tpu.memory_space<vmem>>, vector<8x64xf32>
    tpu.vector_store %arg15[%c8_44, %c0_45], %170 {strides = array<i32>} : memref<64x64xf32, #tpu.memory_space<vmem>>, vector<8x64xf32>,
    %173 = vector.extract_strided_slice %6 {offsets = [56, 0], sizes = [8, 192], strides = [1, 1]} : vector<64x192xf32> to vector<8x192xf32>
    %cst_46 = arith.constant dense<0.000000e+00> : vector<8x192xf32>
    %174 = tpu.matmul %170, %8, %cst_46 {dimension_numbers = #tpu.dot_dimension_numbers<[1], [0], [0], [1], [0, 0, 1, 1], [], []>} : vector<8x64xf32>, vector<64x192xf32>, vector<8x192xf32> -> vector<8x192xf32>
    %175 = vector.extract_strided_slice %173 {offsets = [0, 0], sizes = [8, 128], strides = [1, 1]} : vector<8x192xf32> to vector<8x128xf32>
    %176 = vector.extract_strided_slice %174 {offsets = [0, 0], sizes = [8, 128], strides = [1, 1]} : vector<8x192xf32> to vector<8x128xf32>
    %177 = arith.addf %175, %176 : vector<8x128xf32>
    %178 = arith.negf %177 : vector<8x128xf32>
    %179 = math.exp %178 : vector<8x128xf32>
    %cst_47 = arith.constant 1.000000e+00 : f32
    %180 = vector.broadcast %cst_47 : f32 to vector<8x128xf32>
    %181 = arith.addf %180, %179 : vector<8x128xf32>
    %182 = arith.divf %180, %181 : vector<8x128xf32>
    %183 = vector.extract_strided_slice %182 {offsets = [0, 0], sizes = [8, 64], strides = [1, 1]} : vector<8x128xf32> to vector<8x64xf32>
    %184 = vector.extract_strided_slice %182 {offsets = [0, 64], sizes = [8, 64], strides = [1, 1]} : vector<8x128xf32> to vector<8x64xf32>
    %185 = vector.extract_strided_slice %173 {offsets = [0, 128], sizes = [8, 64], strides = [1, 1]} : vector<8x192xf32> to vector<8x64xf32>
    %186 = vector.extract_strided_slice %174 {offsets = [0, 128], sizes = [8, 64], strides = [1, 1]} : vector<8x192xf32> to vector<8x64xf32>
    %187 = arith.addf %186, %11 : vector<8x64xf32>
    %188 = arith.mulf %183, %187 : vector<8x64xf32>
    %189 = arith.addf %185, %188 : vector<8x64xf32>
    %190 = math.tanh %189 : vector<8x64xf32>
    %191 = arith.subf %170, %190 : vector<8x64xf32>
    %192 = arith.mulf %184, %191 : vector<8x64xf32>
    %193 = arith.addf %190, %192 : vector<8x64xf32>
    %c56_48 = arith.constant 56 : index
    %c0_49 = arith.constant 0 : index
    %194 = vector.load %arg14[%c56_48, %c0_49] : memref<64x64xf32, #tpu.memory_space<vmem>>, vector<8x64xf32>
    tpu.vector_store %arg14[%c56_48, %c0_49], %193 {strides = array<i32>} : memref<64x64xf32, #tpu.memory_space<vmem>>, vector<8x64xf32>,
    %c0_50 = arith.constant 0 : index
    %c0_51 = arith.constant 0 : index
    %195 = vector.load %arg15[%c0_50, %c0_51] : memref<64x64xf32, #tpu.memory_space<vmem>>, vector<8x64xf32>
    tpu.vector_store %arg15[%c0_50, %c0_51], %193 {strides = array<i32>} : memref<64x64xf32, #tpu.memory_space<vmem>>, vector<8x64xf32>,
    %c0_52 = arith.constant 0 : index
    %c0_53 = arith.constant 0 : index
    %196 = vector.load %arg14[%c0_52, %c0_53] : memref<64x64xf32, #tpu.memory_space<vmem>>, vector<64x64xf32>
    %c0_54 = arith.constant 0 : index
    %c0_55 = arith.constant 0 : index
    %197 = vector.load %arg6[%c0_54, %c0_55] : memref<64x192xf32, #tpu.memory_space<vmem>>, vector<64x192xf32>
    %cst_56 = arith.constant dense<0.000000e+00> : vector<64x192xf32>
    %198 = tpu.matmul %196, %197, %cst_56 {dimension_numbers = #tpu.dot_dimension_numbers<[1], [0], [0], [1], [0, 0, 1, 1], [], []>} : vector<64x64xf32>, vector<64x192xf32>, vector<64x192xf32> -> vector<64x192xf32>
    %c0_57 = arith.constant 0 : index
    %c0_58 = arith.constant 0 : index
    %199 = vector.load %arg15[%c0_57, %c0_58] : memref<64x64xf32, #tpu.memory_space<vmem>>, vector<64x64xf32>
    %c0_59 = arith.constant 0 : index
    %c0_60 = arith.constant 0 : index
    %200 = vector.load %arg7[%c0_59, %c0_60] : memref<64x192xf32, #tpu.memory_space<vmem>>, vector<64x192xf32>
    %cst_61 = arith.constant dense<0.000000e+00> : vector<64x192xf32>
    %201 = tpu.matmul %199, %200, %cst_61 {dimension_numbers = #tpu.dot_dimension_numbers<[1], [0], [0], [1], [0, 0, 1, 1], [], []>} : vector<64x64xf32>, vector<64x192xf32>, vector<64x192xf32> -> vector<64x192xf32>
    %202 = arith.addf %198, %201 : vector<64x192xf32>
    %c0_62 = arith.constant 0 : index
    %c0_63 = arith.constant 0 : index
    %203 = vector.load %arg8[%c0_62, %c0_63] : memref<1x192xf32, #tpu.memory_space<vmem>>, vector<1x192xf32>
    %204 = vector.broadcast %203 : vector<1x192xf32> to vector<64x192xf32>
    %205 = arith.addf %202, %204 : vector<64x192xf32>
    %c0_64 = arith.constant 0 : index
    %c0_65 = arith.constant 0 : index
    %206 = vector.load %arg9[%c0_64, %c0_65] : memref<64x192xf32, #tpu.memory_space<vmem>>, vector<64x192xf32>
    %c0_66 = arith.constant 0 : index
    %c0_67 = arith.constant 0 : index
    %207 = vector.load %arg10[%c0_66, %c0_67] : memref<1x64xf32, #tpu.memory_space<vmem>>, vector<1x64xf32>
    %208 = vector.shape_cast %207 : vector<1x64xf32> to vector<1x64xf32>
    %209 = vector.broadcast %208 : vector<1x64xf32> to vector<8x64xf32>
    %210 = vector.extract_strided_slice %205 {offsets = [0, 0], sizes = [8, 192], strides = [1, 1]} : vector<64x192xf32> to vector<8x192xf32>
    %cst_68 = arith.constant dense<0.000000e+00> : vector<8x192xf32>
    %211 = tpu.matmul %7, %206, %cst_68 {dimension_numbers = #tpu.dot_dimension_numbers<[1], [0], [0], [1], [0, 0, 1, 1], [], []>} : vector<8x64xf32>, vector<64x192xf32>, vector<8x192xf32> -> vector<8x192xf32>
    %212 = vector.extract_strided_slice %210 {offsets = [0, 0], sizes = [8, 128], strides = [1, 1]} : vector<8x192xf32> to vector<8x128xf32>
    %213 = vector.extract_strided_slice %211 {offsets = [0, 0], sizes = [8, 128], strides = [1, 1]} : vector<8x192xf32> to vector<8x128xf32>
    %214 = arith.addf %212, %213 : vector<8x128xf32>
    %215 = arith.negf %214 : vector<8x128xf32>
    %216 = math.exp %215 : vector<8x128xf32>
    %cst_69 = arith.constant 1.000000e+00 : f32
    %217 = vector.broadcast %cst_69 : f32 to vector<8x128xf32>
    %218 = arith.addf %217, %216 : vector<8x128xf32>
    %219 = arith.divf %217, %218 : vector<8x128xf32>
    %220 = vector.extract_strided_slice %219 {offsets = [0, 0], sizes = [8, 64], strides = [1, 1]} : vector<8x128xf32> to vector<8x64xf32>
    %221 = vector.extract_strided_slice %219 {offsets = [0, 64], sizes = [8, 64], strides = [1, 1]} : vector<8x128xf32> to vector<8x64xf32>
    %222 = vector.extract_strided_slice %210 {offsets = [0, 128], sizes = [8, 64], strides = [1, 1]} : vector<8x192xf32> to vector<8x64xf32>
    %223 = vector.extract_strided_slice %211 {offsets = [0, 128], sizes = [8, 64], strides = [1, 1]} : vector<8x192xf32> to vector<8x64xf32>
    %224 = arith.addf %223, %209 : vector<8x64xf32>
    %225 = arith.mulf %220, %224 : vector<8x64xf32>
    %226 = arith.addf %222, %225 : vector<8x64xf32>
    %227 = math.tanh %226 : vector<8x64xf32>
    %228 = arith.subf %7, %227 : vector<8x64xf32>
    %229 = arith.mulf %221, %228 : vector<8x64xf32>
    %230 = arith.addf %227, %229 : vector<8x64xf32>
    %231 = vector.extract_strided_slice %205 {offsets = [8, 0], sizes = [8, 192], strides = [1, 1]} : vector<64x192xf32> to vector<8x192xf32>
    %cst_70 = arith.constant dense<0.000000e+00> : vector<8x192xf32>
    %232 = tpu.matmul %230, %206, %cst_70 {dimension_numbers = #tpu.dot_dimension_numbers<[1], [0], [0], [1], [0, 0, 1, 1], [], []>} : vector<8x64xf32>, vector<64x192xf32>, vector<8x192xf32> -> vector<8x192xf32>
    %233 = vector.extract_strided_slice %231 {offsets = [0, 0], sizes = [8, 128], strides = [1, 1]} : vector<8x192xf32> to vector<8x128xf32>
    %234 = vector.extract_strided_slice %232 {offsets = [0, 0], sizes = [8, 128], strides = [1, 1]} : vector<8x192xf32> to vector<8x128xf32>
    %235 = arith.addf %233, %234 : vector<8x128xf32>
    %236 = arith.negf %235 : vector<8x128xf32>
    %237 = math.exp %236 : vector<8x128xf32>
    %cst_71 = arith.constant 1.000000e+00 : f32
    %238 = vector.broadcast %cst_71 : f32 to vector<8x128xf32>
    %239 = arith.addf %238, %237 : vector<8x128xf32>
    %240 = arith.divf %238, %239 : vector<8x128xf32>
    %241 = vector.extract_strided_slice %240 {offsets = [0, 0], sizes = [8, 64], strides = [1, 1]} : vector<8x128xf32> to vector<8x64xf32>
    %242 = vector.extract_strided_slice %240 {offsets = [0, 64], sizes = [8, 64], strides = [1, 1]} : vector<8x128xf32> to vector<8x64xf32>
    %243 = vector.extract_strided_slice %231 {offsets = [0, 128], sizes = [8, 64], strides = [1, 1]} : vector<8x192xf32> to vector<8x64xf32>
    %244 = vector.extract_strided_slice %232 {offsets = [0, 128], sizes = [8, 64], strides = [1, 1]} : vector<8x192xf32> to vector<8x64xf32>
    %245 = arith.addf %244, %209 : vector<8x64xf32>
    %246 = arith.mulf %241, %245 : vector<8x64xf32>
    %247 = arith.addf %243, %246 : vector<8x64xf32>
    %248 = math.tanh %247 : vector<8x64xf32>
    %249 = arith.subf %230, %248 : vector<8x64xf32>
    %250 = arith.mulf %242, %249 : vector<8x64xf32>
    %251 = arith.addf %248, %250 : vector<8x64xf32>
    %252 = vector.extract_strided_slice %205 {offsets = [16, 0], sizes = [8, 192], strides = [1, 1]} : vector<64x192xf32> to vector<8x192xf32>
    %cst_72 = arith.constant dense<0.000000e+00> : vector<8x192xf32>
    %253 = tpu.matmul %251, %206, %cst_72 {dimension_numbers = #tpu.dot_dimension_numbers<[1], [0], [0], [1], [0, 0, 1, 1], [], []>} : vector<8x64xf32>, vector<64x192xf32>, vector<8x192xf32> -> vector<8x192xf32>
    %254 = vector.extract_strided_slice %252 {offsets = [0, 0], sizes = [8, 128], strides = [1, 1]} : vector<8x192xf32> to vector<8x128xf32>
    %255 = vector.extract_strided_slice %253 {offsets = [0, 0], sizes = [8, 128], strides = [1, 1]} : vector<8x192xf32> to vector<8x128xf32>
    %256 = arith.addf %254, %255 : vector<8x128xf32>
    %257 = arith.negf %256 : vector<8x128xf32>
    %258 = math.exp %257 : vector<8x128xf32>
    %cst_73 = arith.constant 1.000000e+00 : f32
    %259 = vector.broadcast %cst_73 : f32 to vector<8x128xf32>
    %260 = arith.addf %259, %258 : vector<8x128xf32>
    %261 = arith.divf %259, %260 : vector<8x128xf32>
    %262 = vector.extract_strided_slice %261 {offsets = [0, 0], sizes = [8, 64], strides = [1, 1]} : vector<8x128xf32> to vector<8x64xf32>
    %263 = vector.extract_strided_slice %261 {offsets = [0, 64], sizes = [8, 64], strides = [1, 1]} : vector<8x128xf32> to vector<8x64xf32>
    %264 = vector.extract_strided_slice %252 {offsets = [0, 128], sizes = [8, 64], strides = [1, 1]} : vector<8x192xf32> to vector<8x64xf32>
    %265 = vector.extract_strided_slice %253 {offsets = [0, 128], sizes = [8, 64], strides = [1, 1]} : vector<8x192xf32> to vector<8x64xf32>
    %266 = arith.addf %265, %209 : vector<8x64xf32>
    %267 = arith.mulf %262, %266 : vector<8x64xf32>
    %268 = arith.addf %264, %267 : vector<8x64xf32>
    %269 = math.tanh %268 : vector<8x64xf32>
    %270 = arith.subf %251, %269 : vector<8x64xf32>
    %271 = arith.mulf %263, %270 : vector<8x64xf32>
    %272 = arith.addf %269, %271 : vector<8x64xf32>
    %273 = vector.extract_strided_slice %205 {offsets = [24, 0], sizes = [8, 192], strides = [1, 1]} : vector<64x192xf32> to vector<8x192xf32>
    %cst_74 = arith.constant dense<0.000000e+00> : vector<8x192xf32>
    %274 = tpu.matmul %272, %206, %cst_74 {dimension_numbers = #tpu.dot_dimension_numbers<[1], [0], [0], [1], [0, 0, 1, 1], [], []>} : vector<8x64xf32>, vector<64x192xf32>, vector<8x192xf32> -> vector<8x192xf32>
    %275 = vector.extract_strided_slice %273 {offsets = [0, 0], sizes = [8, 128], strides = [1, 1]} : vector<8x192xf32> to vector<8x128xf32>
    %276 = vector.extract_strided_slice %274 {offsets = [0, 0], sizes = [8, 128], strides = [1, 1]} : vector<8x192xf32> to vector<8x128xf32>
    %277 = arith.addf %275, %276 : vector<8x128xf32>
    %278 = arith.negf %277 : vector<8x128xf32>
    %279 = math.exp %278 : vector<8x128xf32>
    %cst_75 = arith.constant 1.000000e+00 : f32
    %280 = vector.broadcast %cst_75 : f32 to vector<8x128xf32>
    %281 = arith.addf %280, %279 : vector<8x128xf32>
    %282 = arith.divf %280, %281 : vector<8x128xf32>
    %283 = vector.extract_strided_slice %282 {offsets = [0, 0], sizes = [8, 64], strides = [1, 1]} : vector<8x128xf32> to vector<8x64xf32>
    %284 = vector.extract_strided_slice %282 {offsets = [0, 64], sizes = [8, 64], strides = [1, 1]} : vector<8x128xf32> to vector<8x64xf32>
    %285 = vector.extract_strided_slice %273 {offsets = [0, 128], sizes = [8, 64], strides = [1, 1]} : vector<8x192xf32> to vector<8x64xf32>
    %286 = vector.extract_strided_slice %274 {offsets = [0, 128], sizes = [8, 64], strides = [1, 1]} : vector<8x192xf32> to vector<8x64xf32>
    %287 = arith.addf %286, %209 : vector<8x64xf32>
    %288 = arith.mulf %283, %287 : vector<8x64xf32>
    %289 = arith.addf %285, %288 : vector<8x64xf32>
    %290 = math.tanh %289 : vector<8x64xf32>
    %291 = arith.subf %272, %290 : vector<8x64xf32>
    %292 = arith.mulf %284, %291 : vector<8x64xf32>
    %293 = arith.addf %290, %292 : vector<8x64xf32>
    %294 = vector.extract_strided_slice %205 {offsets = [32, 0], sizes = [8, 192], strides = [1, 1]} : vector<64x192xf32> to vector<8x192xf32>
    %cst_76 = arith.constant dense<0.000000e+00> : vector<8x192xf32>
    %295 = tpu.matmul %293, %206, %cst_76 {dimension_numbers = #tpu.dot_dimension_numbers<[1], [0], [0], [1], [0, 0, 1, 1], [], []>} : vector<8x64xf32>, vector<64x192xf32>, vector<8x192xf32> -> vector<8x192xf32>
    %296 = vector.extract_strided_slice %294 {offsets = [0, 0], sizes = [8, 128], strides = [1, 1]} : vector<8x192xf32> to vector<8x128xf32>
    %297 = vector.extract_strided_slice %295 {offsets = [0, 0], sizes = [8, 128], strides = [1, 1]} : vector<8x192xf32> to vector<8x128xf32>
    %298 = arith.addf %296, %297 : vector<8x128xf32>
    %299 = arith.negf %298 : vector<8x128xf32>
    %300 = math.exp %299 : vector<8x128xf32>
    %cst_77 = arith.constant 1.000000e+00 : f32
    %301 = vector.broadcast %cst_77 : f32 to vector<8x128xf32>
    %302 = arith.addf %301, %300 : vector<8x128xf32>
    %303 = arith.divf %301, %302 : vector<8x128xf32>
    %304 = vector.extract_strided_slice %303 {offsets = [0, 0], sizes = [8, 64], strides = [1, 1]} : vector<8x128xf32> to vector<8x64xf32>
    %305 = vector.extract_strided_slice %303 {offsets = [0, 64], sizes = [8, 64], strides = [1, 1]} : vector<8x128xf32> to vector<8x64xf32>
    %306 = vector.extract_strided_slice %294 {offsets = [0, 128], sizes = [8, 64], strides = [1, 1]} : vector<8x192xf32> to vector<8x64xf32>
    %307 = vector.extract_strided_slice %295 {offsets = [0, 128], sizes = [8, 64], strides = [1, 1]} : vector<8x192xf32> to vector<8x64xf32>
    %308 = arith.addf %307, %209 : vector<8x64xf32>
    %309 = arith.mulf %304, %308 : vector<8x64xf32>
    %310 = arith.addf %306, %309 : vector<8x64xf32>
    %311 = math.tanh %310 : vector<8x64xf32>
    %312 = arith.subf %293, %311 : vector<8x64xf32>
    %313 = arith.mulf %305, %312 : vector<8x64xf32>
    %314 = arith.addf %311, %313 : vector<8x64xf32>
    %315 = vector.extract_strided_slice %205 {offsets = [40, 0], sizes = [8, 192], strides = [1, 1]} : vector<64x192xf32> to vector<8x192xf32>
    %cst_78 = arith.constant dense<0.000000e+00> : vector<8x192xf32>
    %316 = tpu.matmul %314, %206, %cst_78 {dimension_numbers = #tpu.dot_dimension_numbers<[1], [0], [0], [1], [0, 0, 1, 1], [], []>} : vector<8x64xf32>, vector<64x192xf32>, vector<8x192xf32> -> vector<8x192xf32>
    %317 = vector.extract_strided_slice %315 {offsets = [0, 0], sizes = [8, 128], strides = [1, 1]} : vector<8x192xf32> to vector<8x128xf32>
    %318 = vector.extract_strided_slice %316 {offsets = [0, 0], sizes = [8, 128], strides = [1, 1]} : vector<8x192xf32> to vector<8x128xf32>
    %319 = arith.addf %317, %318 : vector<8x128xf32>
    %320 = arith.negf %319 : vector<8x128xf32>
    %321 = math.exp %320 : vector<8x128xf32>
    %cst_79 = arith.constant 1.000000e+00 : f32
    %322 = vector.broadcast %cst_79 : f32 to vector<8x128xf32>
    %323 = arith.addf %322, %321 : vector<8x128xf32>
    %324 = arith.divf %322, %323 : vector<8x128xf32>
    %325 = vector.extract_strided_slice %324 {offsets = [0, 0], sizes = [8, 64], strides = [1, 1]} : vector<8x128xf32> to vector<8x64xf32>
    %326 = vector.extract_strided_slice %324 {offsets = [0, 64], sizes = [8, 64], strides = [1, 1]} : vector<8x128xf32> to vector<8x64xf32>
    %327 = vector.extract_strided_slice %315 {offsets = [0, 128], sizes = [8, 64], strides = [1, 1]} : vector<8x192xf32> to vector<8x64xf32>
    %328 = vector.extract_strided_slice %316 {offsets = [0, 128], sizes = [8, 64], strides = [1, 1]} : vector<8x192xf32> to vector<8x64xf32>
    %329 = arith.addf %328, %209 : vector<8x64xf32>
    %330 = arith.mulf %325, %329 : vector<8x64xf32>
    %331 = arith.addf %327, %330 : vector<8x64xf32>
    %332 = math.tanh %331 : vector<8x64xf32>
    %333 = arith.subf %314, %332 : vector<8x64xf32>
    %334 = arith.mulf %326, %333 : vector<8x64xf32>
    %335 = arith.addf %332, %334 : vector<8x64xf32>
    %336 = vector.extract_strided_slice %205 {offsets = [48, 0], sizes = [8, 192], strides = [1, 1]} : vector<64x192xf32> to vector<8x192xf32>
    %cst_80 = arith.constant dense<0.000000e+00> : vector<8x192xf32>
    %337 = tpu.matmul %335, %206, %cst_80 {dimension_numbers = #tpu.dot_dimension_numbers<[1], [0], [0], [1], [0, 0, 1, 1], [], []>} : vector<8x64xf32>, vector<64x192xf32>, vector<8x192xf32> -> vector<8x192xf32>
    %338 = vector.extract_strided_slice %336 {offsets = [0, 0], sizes = [8, 128], strides = [1, 1]} : vector<8x192xf32> to vector<8x128xf32>
    %339 = vector.extract_strided_slice %337 {offsets = [0, 0], sizes = [8, 128], strides = [1, 1]} : vector<8x192xf32> to vector<8x128xf32>
    %340 = arith.addf %338, %339 : vector<8x128xf32>
    %341 = arith.negf %340 : vector<8x128xf32>
    %342 = math.exp %341 : vector<8x128xf32>
    %cst_81 = arith.constant 1.000000e+00 : f32
    %343 = vector.broadcast %cst_81 : f32 to vector<8x128xf32>
    %344 = arith.addf %343, %342 : vector<8x128xf32>
    %345 = arith.divf %343, %344 : vector<8x128xf32>
    %346 = vector.extract_strided_slice %345 {offsets = [0, 0], sizes = [8, 64], strides = [1, 1]} : vector<8x128xf32> to vector<8x64xf32>
    %347 = vector.extract_strided_slice %345 {offsets = [0, 64], sizes = [8, 64], strides = [1, 1]} : vector<8x128xf32> to vector<8x64xf32>
    %348 = vector.extract_strided_slice %336 {offsets = [0, 128], sizes = [8, 64], strides = [1, 1]} : vector<8x192xf32> to vector<8x64xf32>
    %349 = vector.extract_strided_slice %337 {offsets = [0, 128], sizes = [8, 64], strides = [1, 1]} : vector<8x192xf32> to vector<8x64xf32>
    %350 = arith.addf %349, %209 : vector<8x64xf32>
    %351 = arith.mulf %346, %350 : vector<8x64xf32>
    %352 = arith.addf %348, %351 : vector<8x64xf32>
    %353 = math.tanh %352 : vector<8x64xf32>
    %354 = arith.subf %335, %353 : vector<8x64xf32>
    %355 = arith.mulf %347, %354 : vector<8x64xf32>
    %356 = arith.addf %353, %355 : vector<8x64xf32>
    %357 = vector.extract_strided_slice %205 {offsets = [56, 0], sizes = [8, 192], strides = [1, 1]} : vector<64x192xf32> to vector<8x192xf32>
    %cst_82 = arith.constant dense<0.000000e+00> : vector<8x192xf32>
    %358 = tpu.matmul %356, %206, %cst_82 {dimension_numbers = #tpu.dot_dimension_numbers<[1], [0], [0], [1], [0, 0, 1, 1], [], []>} : vector<8x64xf32>, vector<64x192xf32>, vector<8x192xf32> -> vector<8x192xf32>
    %359 = vector.extract_strided_slice %357 {offsets = [0, 0], sizes = [8, 128], strides = [1, 1]} : vector<8x192xf32> to vector<8x128xf32>
    %360 = vector.extract_strided_slice %358 {offsets = [0, 0], sizes = [8, 128], strides = [1, 1]} : vector<8x192xf32> to vector<8x128xf32>
    %361 = arith.addf %359, %360 : vector<8x128xf32>
    %362 = arith.negf %361 : vector<8x128xf32>
    %363 = math.exp %362 : vector<8x128xf32>
    %cst_83 = arith.constant 1.000000e+00 : f32
    %364 = vector.broadcast %cst_83 : f32 to vector<8x128xf32>
    %365 = arith.addf %364, %363 : vector<8x128xf32>
    %366 = arith.divf %364, %365 : vector<8x128xf32>
    %367 = vector.extract_strided_slice %366 {offsets = [0, 0], sizes = [8, 64], strides = [1, 1]} : vector<8x128xf32> to vector<8x64xf32>
    %368 = vector.extract_strided_slice %366 {offsets = [0, 64], sizes = [8, 64], strides = [1, 1]} : vector<8x128xf32> to vector<8x64xf32>
    %369 = vector.extract_strided_slice %357 {offsets = [0, 128], sizes = [8, 64], strides = [1, 1]} : vector<8x192xf32> to vector<8x64xf32>
    %370 = vector.extract_strided_slice %358 {offsets = [0, 128], sizes = [8, 64], strides = [1, 1]} : vector<8x192xf32> to vector<8x64xf32>
    %371 = arith.addf %370, %209 : vector<8x64xf32>
    %372 = arith.mulf %367, %371 : vector<8x64xf32>
    %373 = arith.addf %369, %372 : vector<8x64xf32>
    %374 = math.tanh %373 : vector<8x64xf32>
    %375 = arith.subf %356, %374 : vector<8x64xf32>
    %376 = arith.mulf %368, %375 : vector<8x64xf32>
    %377 = arith.addf %374, %376 : vector<8x64xf32>
    %c0_84 = arith.constant 0 : index
    %c0_85 = arith.constant 0 : index
    %378 = vector.load %arg11[%c0_84, %c0_85] : memref<1x64xf32, #tpu.memory_space<vmem>>, vector<1x64xf32>
    %379 = vector.broadcast %378 : vector<1x64xf32> to vector<8x64xf32>
    %380 = arith.mulf %377, %379 : vector<8x64xf32>
    %cst_86 = arith.constant dense<0.000000e+00> : vector<8xf32>
    %381 = vector.multi_reduction <add>, %380, %cst_86 [1] : vector<8x64xf32> to vector<8xf32>
    %382 = vector.shape_cast %381 : vector<8xf32> to vector<8x1xf32>
    %c0_87 = arith.constant 0 : index
    %c0_88 = arith.constant 0 : index
    %383 = vector.load %arg12[%c0_87, %c0_88] : memref<1x1xf32, #tpu.memory_space<vmem>>, vector<1x1xf32>
    %384 = vector.broadcast %383 : vector<1x1xf32> to vector<8x1xf32>
    %385 = arith.addf %382, %384 : vector<8x1xf32>
    %386 = vector.shape_cast %385 : vector<8x1xf32> to vector<8x1xf32>
    %387 = vector.broadcast %386 : vector<8x1xf32> to vector<8x128xf32>
    %c0_89 = arith.constant 0 : index
    %c0_90 = arith.constant 0 : index
    %c0_91 = arith.constant 0 : index
    %388 = vector.load %arg13[%c0_89, %c0_90, %c0_91] : memref<1x8x128xf32, #tpu.memory_space<vmem>>, vector<1x8x128xf32>
    %389 = vector.shape_cast %388 : vector<1x8x128xf32> to vector<8x128xf32>
    %390 = vector.shape_cast %387 : vector<8x128xf32> to vector<1x8x128xf32>
    tpu.vector_store %arg13[%c0_89, %c0_90, %c0_91], %390 {strides = array<i32>} : memref<1x8x128xf32, #tpu.memory_space<vmem>>, vector<1x8x128xf32>,
    return
  }
  func.func @transform_0(%arg0: i32) -> (i32, i32, i32) {
    %c0_i32 = arith.constant 0 : i32
    %c0_i32_0 = arith.constant 0 : i32
    %c0_i32_1 = arith.constant 0 : i32
    return %arg0, %c0_i32, %c0_i32_0 : i32, i32, i32
  }
  func.func @transform_1(%arg0: i32) -> (i32, i32) {
    %c0_i32 = arith.constant 0 : i32
    %c0_i32_0 = arith.constant 0 : i32
    %c0_i32_1 = arith.constant 0 : i32
    return %c0_i32, %c0_i32_0 : i32, i32
  }
  func.func @transform_2(%arg0: i32) -> (i32, i32) {
    %c0_i32 = arith.constant 0 : i32
    %c0_i32_0 = arith.constant 0 : i32
    %c0_i32_1 = arith.constant 0 : i32
    return %c0_i32, %c0_i32_0 : i32, i32
  }
  func.func @transform_3(%arg0: i32) -> (i32, i32) {
    %c0_i32 = arith.constant 0 : i32
    %c0_i32_0 = arith.constant 0 : i32
    %c0_i32_1 = arith.constant 0 : i32
    return %c0_i32, %c0_i32_0 : i32, i32
  }
  func.func @transform_4(%arg0: i32) -> (i32, i32) {
    %c0_i32 = arith.constant 0 : i32
    %c0_i32_0 = arith.constant 0 : i32
    %c0_i32_1 = arith.constant 0 : i32
    return %c0_i32, %c0_i32_0 : i32, i32
  }
  func.func @transform_5(%arg0: i32) -> (i32, i32) {
    %c0_i32 = arith.constant 0 : i32
    %c0_i32_0 = arith.constant 0 : i32
    %c0_i32_1 = arith.constant 0 : i32
    return %c0_i32, %c0_i32_0 : i32, i32
  }
  func.func @transform_6(%arg0: i32) -> (i32, i32) {
    %c0_i32 = arith.constant 0 : i32
    %c0_i32_0 = arith.constant 0 : i32
    %c0_i32_1 = arith.constant 0 : i32
    return %c0_i32, %c0_i32_0 : i32, i32
  }
  func.func @transform_7(%arg0: i32) -> (i32, i32) {
    %c0_i32 = arith.constant 0 : i32
    %c0_i32_0 = arith.constant 0 : i32
    %c0_i32_1 = arith.constant 0 : i32
    return %c0_i32, %c0_i32_0 : i32, i32
  }
  func.func @transform_8(%arg0: i32) -> (i32, i32) {
    %c0_i32 = arith.constant 0 : i32
    %c0_i32_0 = arith.constant 0 : i32
    %c0_i32_1 = arith.constant 0 : i32
    return %c0_i32, %c0_i32_0 : i32, i32
  }
  func.func @transform_9(%arg0: i32) -> (i32, i32) {
    %c0_i32 = arith.constant 0 : i32
    %c0_i32_0 = arith.constant 0 : i32
    %c0_i32_1 = arith.constant 0 : i32
    return %c0_i32, %c0_i32_0 : i32, i32
  }
  func.func @transform_10(%arg0: i32) -> (i32, i32) {
    %c0_i32 = arith.constant 0 : i32
    %c0_i32_0 = arith.constant 0 : i32
    %c0_i32_1 = arith.constant 0 : i32
    return %c0_i32, %c0_i32_0 : i32, i32
  }
  func.func @transform_11(%arg0: i32) -> (i32, i32) {
    %c0_i32 = arith.constant 0 : i32
    %c0_i32_0 = arith.constant 0 : i32
    %c0_i32_1 = arith.constant 0 : i32
    return %c0_i32, %c0_i32_0 : i32, i32
  }
  func.func @transform_12(%arg0: i32) -> (i32, i32, i32) {
    %c0_i32 = arith.constant 0 : i32
    %c0_i32_0 = arith.constant 0 : i32
    %c0_i32_1 = arith.constant 0 : i32
    return %arg0, %c0_i32, %c0_i32_0 : i32, i32, i32
  }
}

</mosaic_0001>

<llo_original>
// kernel: discriminator_forward.1
$region0: #{discriminator_forward.1}
  #allocation0 [shape = 'u32[]', space=smem, size = 0x4, offset = 0x4, fixed_abs, tag = 'smem constant byte address 0x4 - core index']
  #allocation1 [shape = 'u32[144,128]{1,0:T(1,128)}', space=vmem, size = 0x12000, scoped, tag = 'internal scratch']
  #allocation2 [shape = 'f32[64,64]{1,0:T(8,128)}', space=vmem, size = 0x8000, scoped, tag = 'scratch operand']
  #allocation3 [shape = 'f32[64,64]{1,0:T(8,128)}', space=vmem, size = 0x8000, scoped, tag = 'scratch operand']
  #allocation4 [shape = 'f32[1,1]{1,0:T(1,128)S(1)}', space=vmem, size = 0x200, scoped, tag = 'scoped memory for discriminator_forward.1']
  %s0 = inlined_call_operand.vmem [shape: f32[1,64,8], index: 0, kind: input, shape index: {}]
  %s1 = inlined_call_operand.vmem [shape: f32[8,192], index: 1, kind: input, shape index: {}]
  %s2 = inlined_call_operand.vmem [shape: f32[1,192], index: 2, kind: input, shape index: {}]
  %s3 = inlined_call_operand.vmem [shape: f32[64,192], index: 3, kind: input, shape index: {}]
  %s4 = inlined_call_operand.vmem [shape: f32[1,64], index: 4, kind: input, shape index: {}]
  %s5 = inlined_call_operand.vmem [shape: f32[64,192], index: 5, kind: input, shape index: {}]
  %s6 = inlined_call_operand.hbm [shape: f32[64,192], index: 6, kind: input, shape index: {}]
  %s7 = inlined_call_operand.vmem [shape: f32[1,192], index: 7, kind: input, shape index: {}]
  %s8 = inlined_call_operand.hbm [shape: f32[64,192], index: 8, kind: input, shape index: {}]
  %s9 = inlined_call_operand.vmem [shape: f32[1,64], index: 9, kind: input, shape index: {}]
  %s10 = inlined_call_operand.vmem [shape: f32[1,64], index: 10, kind: input, shape index: {}]
  %s11 = inlined_call_operand.<no memory space> [shape: f32[1,1], index: 11, kind: input, shape index: {}]
  %s12 = inlined_call_operand.vmem [shape: f32[1,8,128], index: 12, kind: output, shape index: {}]
  %s13 = sld [smem:[#allocation0]]
  $region66: #{discriminator_forward.1} parent=0
    _
  %s15 = ssub.s32 1, %s13
  %s16 = scalar_select 0, %s15, %s13
  %v17 = vstv %s11
  %18 = vst [vmem:[#allocation4] sm:$0x1] %v17
  $region1: #{discriminator_forward.1} parent=0
    #allocation5 [shape = 'u8[65536]{0}', space=vmem, size = 0x10000, scoped, tag = 'input window, operand 6, single buffered']
    #allocation6 [shape = 's32[1]{0}', space=sflag, size = 0x4, scoped, tag = 'scoped memory for discriminator_forward.1']
    #allocation7 [shape = 'u8[65536]{0}', space=vmem, size = 0x10000, scoped, tag = 'input window, operand 8, single buffered']
    #allocation8 [shape = 's32[1]{0}', space=sflag, size = 0x4, scoped, tag = 'scoped memory for discriminator_forward.1']
    %19 = vsyncpa [#allocation6], 0
    %20 = vsyncpa [#allocation8], 0
    // Predicated region
    $region2: #{discriminator_forward.1} parent=1 // pred_check
      _
    $region3: #{discriminator_forward.1} parent=1 // pred_check_branch
      %22 = sbr.rel (0) target = $region5
    $region4: #{discriminator_forward.1} parent=1 // pred_region
      _
    $region5: #{discriminator_forward.1} parent=1 // pred_fallthru
      _
    // Predicated region
    $region6: #{discriminator_forward.1} parent=1 // pred_check
      _
    $region7: #{discriminator_forward.1} parent=1 // pred_check_branch
      %24 = sbr.rel (0) target = $region9
    $region8: #{discriminator_forward.1} parent=1 // pred_region
      _
    $region9: #{discriminator_forward.1} parent=1 // pred_fallthru
      _
    // Predicated region
    $region10: #{discriminator_forward.1} parent=1 // pred_check
      _
    $region11: #{discriminator_forward.1} parent=1 // pred_check_branch
      %26 = sbr.rel (0) target = $region13
    $region12: #{discriminator_forward.1} parent=1 // pred_region
      _
    $region13: #{discriminator_forward.1} parent=1 // pred_fallthru
      _
    // Predicated region
    $region14: #{discriminator_forward.1} parent=1 // pred_check
      _
    $region15: #{discriminator_forward.1} parent=1 // pred_check_branch
      %28 = sbr.rel (0) target = $region17
    $region16: #{discriminator_forward.1} parent=1 // pred_region
      _
    $region17: #{discriminator_forward.1} parent=1 // pred_fallthru
      _
    // Predicated region
    $region18: #{discriminator_forward.1} parent=1 // pred_check
      _
    $region19: #{discriminator_forward.1} parent=1 // pred_check_branch
      %30 = sbr.rel (0) target = $region21
    $region20: #{discriminator_forward.1} parent=1 // pred_region
      _
    $region21: #{discriminator_forward.1} parent=1 // pred_fallthru
      _
    // Predicated region
    $region22: #{discriminator_forward.1} parent=1 // pred_check
      _
    $region23: #{discriminator_forward.1} parent=1 // pred_check_branch
      %32 = sbr.rel (0) target = $region25
    $region24: #{discriminator_forward.1} parent=1 // pred_region
      _
    $region25: #{discriminator_forward.1} parent=1 // pred_fallthru
      _
    // Predicated region
    $region26: #{discriminator_forward.1} parent=1 // pred_check
      _
    $region27: #{discriminator_forward.1} parent=1 // pred_check_branch
      %34 = sbr.rel (0) target = $region29
    $region28: #{discriminator_forward.1} parent=1 // pred_region
      %s36 = ssub.s32 2048, 2048
      %37 = vsyncadd [#allocation6], %s36
      %s38 = sshll.u32 [#allocation5], 4
      %s39 = int_to_ptr.vmem [resolvable:$true] %s38
      %44 = dma.hbm_to_vmem [thread:$0]  %s6, 2048, %s39, [#allocation6], 256, 256, 16
    $region29: #{discriminator_forward.1} parent=1 // pred_fallthru
      _
    // Predicated region
    $region30: #{discriminator_forward.1} parent=1 // pred_check
      _
    $region31: #{discriminator_forward.1} parent=1 // pred_check_branch
      %46 = sbr.rel (0) target = $region33
    $region32: #{discriminator_forward.1} parent=1 // pred_region
      _
    $region33: #{discriminator_forward.1} parent=1 // pred_fallthru
      _
    // Predicated region
    $region34: #{discriminator_forward.1} parent=1 // pred_check
      _
    $region35: #{discriminator_forward.1} parent=1 // pred_check_branch
      %48 = sbr.rel (0) target = $region37
    $region36: #{discriminator_forward.1} parent=1 // pred_region
      %s50 = ssub.s32 2048, 2048
      %51 = vsyncadd [#allocation8], %s50
      %s52 = sshll.u32 [#allocation7], 4
      %s53 = int_to_ptr.vmem [resolvable:$true] %s52
      %58 = dma.hbm_to_vmem [thread:$0]  %s8, 2048, %s53, [#allocation8], 256, 256, 16
    $region37: #{discriminator_forward.1} parent=1 // pred_fallthru
      _
    // Predicated region
    $region38: #{discriminator_forward.1} parent=1 // pred_check
      _
    $region39: #{discriminator_forward.1} parent=1 // pred_check_branch
      %60 = sbr.rel (0) target = $region41
    $region40: #{discriminator_forward.1} parent=1 // pred_region
      _
    $region41: #{discriminator_forward.1} parent=1 // pred_fallthru
      _
    // Predicated region
    $region42: #{discriminator_forward.1} parent=1 // pred_check
      _
    $region43: #{discriminator_forward.1} parent=1 // pred_check_branch
      %62 = sbr.rel (0) target = $region45
    $region44: #{discriminator_forward.1} parent=1 // pred_region
      _
    $region45: #{discriminator_forward.1} parent=1 // pred_fallthru
      _
    // Predicated region
    $region46: #{discriminator_forward.1} parent=1 // pred_check
      _
    $region47: #{discriminator_forward.1} parent=1 // pred_check_branch
      %64 = sbr.rel (0) target = $region49
    $region48: #{discriminator_forward.1} parent=1 // pred_region
      _
    $region49: #{discriminator_forward.1} parent=1 // pred_fallthru
      _
    // Predicated region
    $region50: #{discriminator_forward.1} parent=1 // pred_check
      _
    $region51: #{discriminator_forward.1} parent=1 // pred_check_branch
      %66 = sbr.rel (0) target = $region53
    $region52: #{discriminator_forward.1} parent=1 // pred_region
      %67 = dma.done [#allocation6], 2048
    $region53: #{discriminator_forward.1} parent=1 // pred_fallthru
      _
    // Predicated region
    $region54: #{discriminator_forward.1} parent=1 // pred_check
      _
    $region55: #{discriminator_forward.1} parent=1 // pred_check_branch
      %69 = sbr.rel (0) target = $region57
    $region56: #{discriminator_forward.1} parent=1 // pred_region
      %70 = dma.done [#allocation8], 2048
    $region57: #{discriminator_forward.1} parent=1 // pred_fallthru
      _
    %v71 = vld [vmem:[%s0] sm:$0xff]
    %v72 = vld [vmem:[%s0 + $0x8] sm:$0xff]
    %v73 = vld [vmem:[%s0 + $0x10] sm:$0xff]
    %v74 = vld [vmem:[%s0 + $0x18] sm:$0xff]
    %v75 = vld [vmem:[%s0 + $0x20] sm:$0xff]
    %v76 = vld [vmem:[%s0 + $0x28] sm:$0xff]
    %v77 = vld [vmem:[%s0 + $0x30] sm:$0xff]
    %v78 = vld [vmem:[%s0 + $0x38] sm:$0xff]
    %v79 = vld [vmem:[%s1] sm:$0xff]
    %v80 = vld [vmem:[%s1 + $0x8] sm:$0xff]
    %v81 = vld [vmem:[%s2] sm:$0x3]
    %v83 = vlaneseq
    %v84 = vshrl.u32 %v83, 7
    %v85 = vsub.s32 0, %v84
    %v86 = vrot.slane %v81, %v85
    %v87 = vlaneseq
    %v88 = vshrl.u32 %v87, 7
    %v89 = vsub.s32 1, %v88
    %v90 = vrot.slane %v81, %v89
    %vm93 = vcmask 64512
    %v95 = vsel %vm93, %v71, 0
    %v98 = vsel %vm93, %v72, 0
    %v101 = vsel %vm93, %v73, 0
    %v104 = vsel %vm93, %v74, 0
    %v107 = vsel %vm93, %v75, 0
    %v110 = vsel %vm93, %v76, 0
    %v113 = vsel %vm93, %v77, 0
    %v116 = vsel %vm93, %v78, 0
    %118 = vmatprep.subr.mxu0 0.0
    %119 = vmatpush1.msra.mxu0 0.0
    %120 = vmatprep.subr.mxu0 0.0
    %121 = vmatpush1.msra.mxu0 0.0
    %122 = vmatprep.subr.mxu0 0.0
    %123 = vmatpush1.msra.mxu0 0.0
    %124 = vmatprep.subr.mxu0 0.0
    %125 = vmatpush1.msra.mxu0 0.0
    %126 = vmatprep.subr.mxu0 0.0
    %127 = vmatpush1.msra.mxu0 0.0
    %128 = vmatprep.subr.mxu0 0.0
    %129 = vmatpush1.msra.mxu0 0.0
    %130 = vmatprep.subr.mxu0 0.0
    %131 = vmatpush1.msra.mxu0 0.0
    %132 = vmatprep.subr.mxu0 0.0
    %133 = vmatpush1.msra.mxu0 0.0
    %134 = vmatprep.subr.mxu0 0.0
    %135 = vmatpush1.msra.mxu0 0.0
    %136 = vmatprep.subr.mxu0 0.0
    %137 = vmatpush1.msra.mxu0 0.0
    %138 = vmatprep.subr.mxu0 0.0
    %139 = vmatpush1.msra.mxu0 0.0
    %140 = vmatprep.subr.mxu0 0.0
    %141 = vmatpush1.msra.mxu0 0.0
    %142 = vmatprep.subr.mxu0 0.0
    %143 = vmatpush1.msra.mxu0 0.0
    %144 = vmatprep.subr.mxu0 0.0
    %145 = vmatpush1.msra.mxu0 0.0
    %146 = vmatprep.subr.mxu0 0.0
    %147 = vmatpush1.msra.mxu0 0.0
    %148 = vmatprep.subr.mxu0 %v80
    %149 = vmatpush1.msra.mxu0 %v79
    %150 = vmatprep.subr.mxu0 0.0
    %151 = vmatpush2.msra.mxu0 0.0
    %152 = vmatprep.subr.mxu0 0.0
    %153 = vmatpush2.msra.mxu0 0.0
    %154 = vmatprep.subr.mxu0 0.0
    %155 = vmatpush2.msra.mxu0 0.0
    %156 = vmatprep.subr.mxu0 0.0
    %157 = vmatpush2.msra.mxu0 0.0
    %158 = vmatprep.subr.mxu0 0.0
    %159 = vmatpush2.msra.mxu0 0.0
    %160 = vmatprep.subr.mxu0 0.0
    %161 = vmatpush2.msra.mxu0 0.0
    %162 = vmatprep.subr.mxu0 0.0
    %163 = vmatpush2.msra.mxu0 0.0
    %164 = vmatprep.subr.mxu0 0.0
    %165 = vmatpush2.msra.mxu0 0.0
    %166 = vmatprep.subr.mxu0 0.0
    %167 = vmatpush2.msra.mxu0 0.0
    %168 = vmatprep.subr.mxu0 0.0
    %169 = vmatpush2.msra.mxu0 0.0
    %170 = vmatprep.subr.mxu0 0.0
    %171 = vmatpush2.msra.mxu0 0.0
    %172 = vmatprep.subr.mxu0 0.0
    %173 = vmatpush2.msra.mxu0 0.0
    %174 = vmatprep.subr.mxu0 0.0
    %175 = vmatpush2.msra.mxu0 0.0
    %176 = vmatprep.subr.mxu0 0.0
    %177 = vmatpush2.msra.mxu0 0.0
    %178 = vmatprep.subr.mxu0 0.0
    %179 = vmatpush2.msra.mxu0 0.0
    %180 = vmatprep.subr.mxu0 0.0
    %181 = vmatpush2.msra.mxu0 0.0
    %182 = vmatprep.mubr.f32.mxu0 0.0
    %183 = vmatmul.mubr.f32.gmra.mxu0 %v95
    %v184 = vpop.f32.mrf.mxu0
    %v185 = vadd.f32 %v86, %v184
    %v186 = vpop.f32.mrf.mxu0
    %v187 = vadd.f32 %v90, %v186
    %188 = vmatprep.mubr.f32.mxu0 0.0
    %189 = vmatmul.mubr.f32.gmra.mxu0 %v98
    %v190 = vpop.f32.mrf.mxu0
    %v191 = vadd.f32 %v86, %v190
    %v192 = vpop.f32.mrf.mxu0
    %v193 = vadd.f32 %v90, %v192
    %194 = vmatprep.mubr.f32.mxu0 0.0
    %195 = vmatmul.mubr.f32.gmra.mxu0 %v101
    %v196 = vpop.f32.mrf.mxu0
    %v197 = vadd.f32 %v86, %v196
    %v198 = vpop.f32.mrf.mxu0
    %v199 = vadd.f32 %v90, %v198
    %200 = vmatprep.mubr.f32.mxu0 0.0
    %201 = vmatmul.mubr.f32.gmra.mxu0 %v104
    %v202 = vpop.f32.mrf.mxu0
    %v203 = vadd.f32 %v86, %v202
    %v204 = vpop.f32.mrf.mxu0
    %v205 = vadd.f32 %v90, %v204
    %206 = vmatprep.mubr.f32.mxu0 0.0
    %207 = vmatmul.mubr.f32.gmra.mxu0 %v107
    %v208 = vpop.f32.mrf.mxu0
    %v209 = vadd.f32 %v86, %v208
    %v210 = vpop.f32.mrf.mxu0
    %v211 = vadd.f32 %v90, %v210
    %212 = vmatprep.mubr.f32.mxu0 0.0
    %213 = vmatmul.mubr.f32.gmra.mxu0 %v110
    %v214 = vpop.f32.mrf.mxu0
    %v215 = vadd.f32 %v86, %v214
    %v216 = vpop.f32.mrf.mxu0
    %v217 = vadd.f32 %v90, %v216
    %218 = vmatprep.mubr.f32.mxu0 0.0
    %219 = vmatmul.mubr.f32.gmra.mxu0 %v113
    %v220 = vpop.f32.mrf.mxu0
    %v221 = vadd.f32 %v86, %v220
    %v222 = vpop.f32.mrf.mxu0
    %v223 = vadd.f32 %v90, %v222
    %224 = vmatprep.mubr.f32.mxu0 0.0
    %225 = vmatmul.mubr.f32.gmra.mxu0 %v116
    %v226 = vpop.f32.mrf.mxu0
    %v227 = vadd.f32 %v86, %v226
    %v228 = vpop.f32.mrf.mxu0
    %v229 = vadd.f32 %v90, %v228
    %230 = vdwg.mxu0
    %v231 = vld [vmem:[%s3] sm:$0xff]
    %v232 = vld [vmem:[%s3 + $0x8] sm:$0xff]
    %v233 = vld [vmem:[%s3 + $0x10] sm:$0xff]
    %v234 = vld [vmem:[%s3 + $0x18] sm:$0xff]
    %v235 = vld [vmem:[%s3 + $0x20] sm:$0xff]
    %v236 = vld [vmem:[%s3 + $0x28] sm:$0xff]
    %v237 = vld [vmem:[%s3 + $0x30] sm:$0xff]
    %v238 = vld [vmem:[%s3 + $0x38] sm:$0xff]
    %v239 = vld [vmem:[%s3 + $0x40] sm:$0xff]
    %v240 = vld [vmem:[%s3 + $0x48] sm:$0xff]
    %v241 = vld [vmem:[%s3 + $0x50] sm:$0xff]
    %v242 = vld [vmem:[%s3 + $0x58] sm:$0xff]
    %v243 = vld [vmem:[%s3 + $0x60] sm:$0xff]
    %v244 = vld [vmem:[%s3 + $0x68] sm:$0xff]
    %v245 = vld [vmem:[%s3 + $0x70] sm:$0xff]
    %v246 = vld [vmem:[%s3 + $0x78] sm:$0xff]
    %v247 = vld [vmem:[%s4] sm:$0x1]
    %v249 = vlaneseq
    %v250 = vshrl.u32 %v249, 7
    %v251 = vsub.s32 0, %v250
    %v252 = vrot.slane %v247, %v251
    %vm254 = vcmask 523264
    %v256 = vsel %vm254, 0.0, 0
    %258 = vmatprep.subr.mxu0 0.0
    %259 = vmatpush1.msra.mxu0 0.0
    %260 = vmatprep.subr.mxu0 0.0
    %261 = vmatpush1.msra.mxu0 0.0
    %262 = vmatprep.subr.mxu0 0.0
    %263 = vmatpush1.msra.mxu0 0.0
    %264 = vmatprep.subr.mxu0 0.0
    %265 = vmatpush1.msra.mxu0 0.0
    %266 = vmatprep.subr.mxu0 0.0
    %267 = vmatpush1.msra.mxu0 0.0
    %268 = vmatprep.subr.mxu0 0.0
    %269 = vmatpush1.msra.mxu0 0.0
    %270 = vmatprep.subr.mxu0 0.0
    %271 = vmatpush1.msra.mxu0 0.0
    %272 = vmatprep.subr.mxu0 0.0
    %273 = vmatpush1.msra.mxu0 0.0
    %274 = vmatprep.subr.mxu0 %v246
    %275 = vmatpush1.msra.mxu0 %v245
    %276 = vmatprep.subr.mxu0 %v244
    %277 = vmatpush1.msra.mxu0 %v243
    %278 = vmatprep.subr.mxu0 %v242
    %279 = vmatpush1.msra.mxu0 %v241
    %280 = vmatprep.subr.mxu0 %v240
    %281 = vmatpush1.msra.mxu0 %v239
    %282 = vmatprep.subr.mxu0 %v238
    %283 = vmatpush1.msra.mxu0 %v237
    %284 = vmatprep.subr.mxu0 %v236
    %285 = vmatpush1.msra.mxu0 %v235
    %286 = vmatprep.subr.mxu0 %v234
    %287 = vmatpush1.msra.mxu0 %v233
    %288 = vmatprep.subr.mxu0 %v232
    %289 = vmatpush1.msra.mxu0 %v231
    %290 = vmatprep.subr.mxu0 0.0
    %291 = vmatpush2.msra.mxu0 0.0
    %292 = vmatprep.subr.mxu0 0.0
    %293 = vmatpush2.msra.mxu0 0.0
    %294 = vmatprep.subr.mxu0 0.0
    %295 = vmatpush2.msra.mxu0 0.0
    %296 = vmatprep.subr.mxu0 0.0
    %297 = vmatpush2.msra.mxu0 0.0
    %298 = vmatprep.subr.mxu0 0.0
    %299 = vmatpush2.msra.mxu0 0.0
    %300 = vmatprep.subr.mxu0 0.0
    %301 = vmatpush2.msra.mxu0 0.0
    %302 = vmatprep.subr.mxu0 0.0
    %303 = vmatpush2.msra.mxu0 0.0
    %304 = vmatprep.subr.mxu0 0.0
    %305 = vmatpush2.msra.mxu0 0.0
    %306 = vmatprep.subr.mxu0 0.0
    %307 = vmatpush2.msra.mxu0 0.0
    %308 = vmatprep.subr.mxu0 0.0
    %309 = vmatpush2.msra.mxu0 0.0
    %310 = vmatprep.subr.mxu0 0.0
    %311 = vmatpush2.msra.mxu0 0.0
    %312 = vmatprep.subr.mxu0 0.0
    %313 = vmatpush2.msra.mxu0 0.0
    %314 = vmatprep.subr.mxu0 0.0
    %315 = vmatpush2.msra.mxu0 0.0
    %316 = vmatprep.subr.mxu0 0.0
    %317 = vmatpush2.msra.mxu0 0.0
    %318 = vmatprep.subr.mxu0 0.0
    %319 = vmatpush2.msra.mxu0 0.0
    %320 = vmatprep.subr.mxu0 0.0
    %321 = vmatpush2.msra.mxu0 0.0
    %322 = vmatprep.mubr.f32.mxu0 0.0
    %323 = vmatmul.mubr.f32.gmra.mxu0 %v256
    %v324 = vpop.f32.mrf.mxu0
    %v325 = vadd.f32 0.0, %v324
    %v326 = vpop.f32.mrf.mxu0
    %v327 = vadd.f32 0.0, %v326
    %328 = vdwg.mxu0
    %v329 = vadd.f32 %v185, %v325
    %v330 = vxor.u32 %v329, 2147483648
    %v331 = vmul.f32 %v330, 1.442695
    %v332 = vpow.pop %v331
    %v333 = vadd.f32 %v332, 1.0
    %v334 = vrcp.pop %v333
    %v335 = vmul.f32 1.0, %v334
    %v336 = vadd.f32 %v327, %v252
    %v337 = vmul.f32 %v335, %v336
    %v338 = vadd.f32 %v187, %v337
    %v339 = vtanh.pop %v338
    %v340 = vsub.f32 0.0, %v339
    %342 = vrot.lane.b32.xlu0 %v340, 64
    %v343 = vpop.permute.xlu0 %342
    %v345 = vmul.f32 %v335, %v343
    %347 = vrot.lane.b32.xlu0 %v345, 64
    %v348 = vpop.permute.xlu0 %347
    %v350 = vadd.f32 %v339, %v348
    %351 = vst.msk [vmem:[#allocation2] sm:$0xff] %vm254, %v350
    %352 = vst.msk [vmem:[#allocation3 + $0x38] sm:$0xff] %vm254, %v350
    %v354 = vsel %vm254, %v350, 0
    %356 = vmatprep.subr.mxu0 0.0
    %357 = vmatpush1.msra.mxu0 0.0
    %358 = vmatprep.subr.mxu0 0.0
    %359 = vmatpush1.msra.mxu0 0.0
    %360 = vmatprep.subr.mxu0 0.0
    %361 = vmatpush1.msra.mxu0 0.0
    %362 = vmatprep.subr.mxu0 0.0
    %363 = vmatpush1.msra.mxu0 0.0
    %364 = vmatprep.subr.mxu0 0.0
    %365 = vmatpush1.msra.mxu0 0.0
    %366 = vmatprep.subr.mxu0 0.0
    %367 = vmatpush1.msra.mxu0 0.0
    %368 = vmatprep.subr.mxu0 0.0
    %369 = vmatpush1.msra.mxu0 0.0
    %370 = vmatprep.subr.mxu0 0.0
    %371 = vmatpush1.msra.mxu0 0.0
    %372 = vmatprep.subr.mxu0 %v246
    %373 = vmatpush1.msra.mxu0 %v245
    %374 = vmatprep.subr.mxu0 %v244
    %375 = vmatpush1.msra.mxu0 %v243
    %376 = vmatprep.subr.mxu0 %v242
    %377 = vmatpush1.msra.mxu0 %v241
    %378 = vmatprep.subr.mxu0 %v240
    %379 = vmatpush1.msra.mxu0 %v239
    %380 = vmatprep.subr.mxu0 %v238
    %381 = vmatpush1.msra.mxu0 %v237
    %382 = vmatprep.subr.mxu0 %v236
    %383 = vmatpush1.msra.mxu0 %v235
    %384 = vmatprep.subr.mxu0 %v234
    %385 = vmatpush1.msra.mxu0 %v233
    %386 = vmatprep.subr.mxu0 %v232
    %387 = vmatpush1.msra.mxu0 %v231
    %388 = vmatprep.subr.mxu0 0.0
    %389 = vmatpush2.msra.mxu0 0.0
    %390 = vmatprep.subr.mxu0 0.0
    %391 = vmatpush2.msra.mxu0 0.0
    %392 = vmatprep.subr.mxu0 0.0
    %393 = vmatpush2.msra.mxu0 0.0
    %394 = vmatprep.subr.mxu0 0.0
    %395 = vmatpush2.msra.mxu0 0.0
    %396 = vmatprep.subr.mxu0 0.0
    %397 = vmatpush2.msra.mxu0 0.0
    %398 = vmatprep.subr.mxu0 0.0
    %399 = vmatpush2.msra.mxu0 0.0
    %400 = vmatprep.subr.mxu0 0.0
    %401 = vmatpush2.msra.mxu0 0.0
    %402 = vmatprep.subr.mxu0 0.0
    %403 = vmatpush2.msra.mxu0 0.0
    %404 = vmatprep.subr.mxu0 0.0
    %405 = vmatpush2.msra.mxu0 0.0
    %406 = vmatprep.subr.mxu0 0.0
    %407 = vmatpush2.msra.mxu0 0.0
    %408 = vmatprep.subr.mxu0 0.0
    %409 = vmatpush2.msra.mxu0 0.0
    %410 = vmatprep.subr.mxu0 0.0
    %411 = vmatpush2.msra.mxu0 0.0
    %412 = vmatprep.subr.mxu0 0.0
    %413 = vmatpush2.msra.mxu0 0.0
    %414 = vmatprep.subr.mxu0 0.0
    %415 = vmatpush2.msra.mxu0 0.0
    %416 = vmatprep.subr.mxu0 0.0
    %417 = vmatpush2.msra.mxu0 0.0
    %418 = vmatprep.subr.mxu0 0.0
    %419 = vmatpush2.msra.mxu0 0.0
    %420 = vmatprep.mubr.f32.mxu0 0.0
    %421 = vmatmul.mubr.f32.gmra.mxu0 %v354
    %v422 = vpop.f32.mrf.mxu0
    %v423 = vadd.f32 0.0, %v422
    %v424 = vpop.f32.mrf.mxu0
    %v425 = vadd.f32 0.0, %v424
    %426 = vdwg.mxu0
    %v427 = vadd.f32 %v191, %v423
    %v428 = vxor.u32 %v427, 2147483648
    %v429 = vmul.f32 %v428, 1.442695
    %v430 = vpow.pop %v429
    %v431 = vadd.f32 %v430, 1.0
    %v432 = vrcp.pop %v431
    %v433 = vmul.f32 1.0, %v432
    %v434 = vadd.f32 %v425, %v252
    %v435 = vmul.f32 %v433, %v434
    %v436 = vadd.f32 %v193, %v435
    %v437 = vtanh.pop %v436
    %v438 = vsub.f32 %v350, %v437
    %440 = vrot.lane.b32.xlu0 %v438, 64
    %v441 = vpop.permute.xlu0 %440
    %v443 = vmul.f32 %v433, %v441
    %445 = vrot.lane.b32.xlu0 %v443, 64
    %v446 = vpop.permute.xlu0 %445
    %v448 = vadd.f32 %v437, %v446
    %449 = vst.msk [vmem:[#allocation2 + $0x8] sm:$0xff] %vm254, %v448
    %450 = vst.msk [vmem:[#allocation3 + $0x30] sm:$0xff] %vm254, %v448
    %v452 = vsel %vm254, %v448, 0
    %454 = vmatprep.subr.mxu0 0.0
    %455 = vmatpush1.msra.mxu0 0.0
    %456 = vmatprep.subr.mxu0 0.0
    %457 = vmatpush1.msra.mxu0 0.0
    %458 = vmatprep.subr.mxu0 0.0
    %459 = vmatpush1.msra.mxu0 0.0
    %460 = vmatprep.subr.mxu0 0.0
    %461 = vmatpush1.msra.mxu0 0.0
    %462 = vmatprep.subr.mxu0 0.0
    %463 = vmatpush1.msra.mxu0 0.0
    %464 = vmatprep.subr.mxu0 0.0
    %465 = vmatpush1.msra.mxu0 0.0
    %466 = vmatprep.subr.mxu0 0.0
    %467 = vmatpush1.msra.mxu0 0.0
    %468 = vmatprep.subr.mxu0 0.0
    %469 = vmatpush1.msra.mxu0 0.0
    %470 = vmatprep.subr.mxu0 %v246
    %471 = vmatpush1.msra.mxu0 %v245
    %472 = vmatprep.subr.mxu0 %v244
    %473 = vmatpush1.msra.mxu0 %v243
    %474 = vmatprep.subr.mxu0 %v242
    %475 = vmatpush1.msra.mxu0 %v241
    %476 = vmatprep.subr.mxu0 %v240
    %477 = vmatpush1.msra.mxu0 %v239
    %478 = vmatprep.subr.mxu0 %v238
    %479 = vmatpush1.msra.mxu0 %v237
    %480 = vmatprep.subr.mxu0 %v236
    %481 = vmatpush1.msra.mxu0 %v235
    %482 = vmatprep.subr.mxu0 %v234
    %483 = vmatpush1.msra.mxu0 %v233
    %484 = vmatprep.subr.mxu0 %v232
    %485 = vmatpush1.msra.mxu0 %v231
    %486 = vmatprep.subr.mxu0 0.0
    %487 = vmatpush2.msra.mxu0 0.0
    %488 = vmatprep.subr.mxu0 0.0
    %489 = vmatpush2.msra.mxu0 0.0
    %490 = vmatprep.subr.mxu0 0.0
    %491 = vmatpush2.msra.mxu0 0.0
    %492 = vmatprep.subr.mxu0 0.0
    %493 = vmatpush2.msra.mxu0 0.0
    %494 = vmatprep.subr.mxu0 0.0
    %495 = vmatpush2.msra.mxu0 0.0
    %496 = vmatprep.subr.mxu0 0.0
    %497 = vmatpush2.msra.mxu0 0.0
    %498 = vmatprep.subr.mxu0 0.0
    %499 = vmatpush2.msra.mxu0 0.0
    %500 = vmatprep.subr.mxu0 0.0
    %501 = vmatpush2.msra.mxu0 0.0
    %502 = vmatprep.subr.mxu0 0.0
    %503 = vmatpush2.msra.mxu0 0.0
    %504 = vmatprep.subr.mxu0 0.0
    %505 = vmatpush2.msra.mxu0 0.0
    %506 = vmatprep.subr.mxu0 0.0
    %507 = vmatpush2.msra.mxu0 0.0
    %508 = vmatprep.subr.mxu0 0.0
    %509 = vmatpush2.msra.mxu0 0.0
    %510 = vmatprep.subr.mxu0 0.0
    %511 = vmatpush2.msra.mxu0 0.0
    %512 = vmatprep.subr.mxu0 0.0
    %513 = vmatpush2.msra.mxu0 0.0
    %514 = vmatprep.subr.mxu0 0.0
    %515 = vmatpush2.msra.mxu0 0.0
    %516 = vmatprep.subr.mxu0 0.0
    %517 = vmatpush2.msra.mxu0 0.0
    %518 = vmatprep.mubr.f32.mxu0 0.0
    %519 = vmatmul.mubr.f32.gmra.mxu0 %v452
    %v520 = vpop.f32.mrf.mxu0
    %v521 = vadd.f32 0.0, %v520
    %v522 = vpop.f32.mrf.mxu0
    %v523 = vadd.f32 0.0, %v522
    %524 = vdwg.mxu0
    %v525 = vadd.f32 %v197, %v521
    %v526 = vxor.u32 %v525, 2147483648
    %v527 = vmul.f32 %v526, 1.442695
    %v528 = vpow.pop %v527
    %v529 = vadd.f32 %v528, 1.0
    %v530 = vrcp.pop %v529
    %v531 = vmul.f32 1.0, %v530
    %v532 = vadd.f32 %v523, %v252
    %v533 = vmul.f32 %v531, %v532
    %v534 = vadd.f32 %v199, %v533
    %v535 = vtanh.pop %v534
    %v536 = vsub.f32 %v448, %v535
    %538 = vrot.lane.b32.xlu0 %v536, 64
    %v539 = vpop.permute.xlu0 %538
    %v541 = vmul.f32 %v531, %v539
    %543 = vrot.lane.b32.xlu0 %v541, 64
    %v544 = vpop.permute.xlu0 %543
    %v546 = vadd.f32 %v535, %v544
    %547 = vst.msk [vmem:[#allocation2 + $0x10] sm:$0xff] %vm254, %v546
    %548 = vst.msk [vmem:[#allocation3 + $0x28] sm:$0xff] %vm254, %v546
    %v550 = vsel %vm254, %v546, 0
    %552 = vmatprep.subr.mxu0 0.0
    %553 = vmatpush1.msra.mxu0 0.0
    %554 = vmatprep.subr.mxu0 0.0
    %555 = vmatpush1.msra.mxu0 0.0
    %556 = vmatprep.subr.mxu0 0.0
    %557 = vmatpush1.msra.mxu0 0.0
    %558 = vmatprep.subr.mxu0 0.0
    %559 = vmatpush1.msra.mxu0 0.0
    %560 = vmatprep.subr.mxu0 0.0
    %561 = vmatpush1.msra.mxu0 0.0
    %562 = vmatprep.subr.mxu0 0.0
    %563 = vmatpush1.msra.mxu0 0.0
    %564 = vmatprep.subr.mxu0 0.0
    %565 = vmatpush1.msra.mxu0 0.0
    %566 = vmatprep.subr.mxu0 0.0
    %567 = vmatpush1.msra.mxu0 0.0
    %568 = vmatprep.subr.mxu0 %v246
    %569 = vmatpush1.msra.mxu0 %v245
    %570 = vmatprep.subr.mxu0 %v244
    %571 = vmatpush1.msra.mxu0 %v243
    %572 = vmatprep.subr.mxu0 %v242
    %573 = vmatpush1.msra.mxu0 %v241
    %574 = vmatprep.subr.mxu0 %v240
    %575 = vmatpush1.msra.mxu0 %v239
    %576 = vmatprep.subr.mxu0 %v238
    %577 = vmatpush1.msra.mxu0 %v237
    %578 = vmatprep.subr.mxu0 %v236
    %579 = vmatpush1.msra.mxu0 %v235
    %580 = vmatprep.subr.mxu0 %v234
    %581 = vmatpush1.msra.mxu0 %v233
    %582 = vmatprep.subr.mxu0 %v232
    %583 = vmatpush1.msra.mxu0 %v231
    %584 = vmatprep.subr.mxu0 0.0
    %585 = vmatpush2.msra.mxu0 0.0
    %586 = vmatprep.subr.mxu0 0.0
    %587 = vmatpush2.msra.mxu0 0.0
    %588 = vmatprep.subr.mxu0 0.0
    %589 = vmatpush2.msra.mxu0 0.0
    %590 = vmatprep.subr.mxu0 0.0
    %591 = vmatpush2.msra.mxu0 0.0
    %592 = vmatprep.subr.mxu0 0.0
    %593 = vmatpush2.msra.mxu0 0.0
    %594 = vmatprep.subr.mxu0 0.0
    %595 = vmatpush2.msra.mxu0 0.0
    %596 = vmatprep.subr.mxu0 0.0
    %597 = vmatpush2.msra.mxu0 0.0
    %598 = vmatprep.subr.mxu0 0.0
    %599 = vmatpush2.msra.mxu0 0.0
    %600 = vmatprep.subr.mxu0 0.0
    %601 = vmatpush2.msra.mxu0 0.0
    %602 = vmatprep.subr.mxu0 0.0
    %603 = vmatpush2.msra.mxu0 0.0
    %604 = vmatprep.subr.mxu0 0.0
    %605 = vmatpush2.msra.mxu0 0.0
    %606 = vmatprep.subr.mxu0 0.0
    %607 = vmatpush2.msra.mxu0 0.0
    %608 = vmatprep.subr.mxu0 0.0
    %609 = vmatpush2.msra.mxu0 0.0
    %610 = vmatprep.subr.mxu0 0.0
    %611 = vmatpush2.msra.mxu0 0.0
    %612 = vmatprep.subr.mxu0 0.0
    %613 = vmatpush2.msra.mxu0 0.0
    %614 = vmatprep.subr.mxu0 0.0
    %615 = vmatpush2.msra.mxu0 0.0
    %616 = vmatprep.mubr.f32.mxu0 0.0
    %617 = vmatmul.mubr.f32.gmra.mxu0 %v550
    %v618 = vpop.f32.mrf.mxu0
    %v619 = vadd.f32 0.0, %v618
    %v620 = vpop.f32.mrf.mxu0
    %v621 = vadd.f32 0.0, %v620
    %622 = vdwg.mxu0
    %v623 = vadd.f32 %v203, %v619
    %v624 = vxor.u32 %v623, 2147483648
    %v625 = vmul.f32 %v624, 1.442695
    %v626 = vpow.pop %v625
    %v627 = vadd.f32 %v626, 1.0
    %v628 = vrcp.pop %v627
    %v629 = vmul.f32 1.0, %v628
    %v630 = vadd.f32 %v621, %v252
    %v631 = vmul.f32 %v629, %v630
    %v632 = vadd.f32 %v205, %v631
    %v633 = vtanh.pop %v632
    %v634 = vsub.f32 %v546, %v633
    %636 = vrot.lane.b32.xlu0 %v634, 64
    %v637 = vpop.permute.xlu0 %636
    %v639 = vmul.f32 %v629, %v637
    %641 = vrot.lane.b32.xlu0 %v639, 64
    %v642 = vpop.permute.xlu0 %641
    %v644 = vadd.f32 %v633, %v642
    %645 = vst.msk [vmem:[#allocation2 + $0x18] sm:$0xff] %vm254, %v644
    %646 = vst.msk [vmem:[#allocation3 + $0x20] sm:$0xff] %vm254, %v644
    %v648 = vsel %vm254, %v644, 0
    %650 = vmatprep.subr.mxu0 0.0
    %651 = vmatpush1.msra.mxu0 0.0
    %652 = vmatprep.subr.mxu0 0.0
    %653 = vmatpush1.msra.mxu0 0.0
    %654 = vmatprep.subr.mxu0 0.0
    %655 = vmatpush1.msra.mxu0 0.0
    %656 = vmatprep.subr.mxu0 0.0
    %657 = vmatpush1.msra.mxu0 0.0
    %658 = vmatprep.subr.mxu0 0.0
    %659 = vmatpush1.msra.mxu0 0.0
    %660 = vmatprep.subr.mxu0 0.0
    %661 = vmatpush1.msra.mxu0 0.0
    %662 = vmatprep.subr.mxu0 0.0
    %663 = vmatpush1.msra.mxu0 0.0
    %664 = vmatprep.subr.mxu0 0.0
    %665 = vmatpush1.msra.mxu0 0.0
    %666 = vmatprep.subr.mxu0 %v246
    %667 = vmatpush1.msra.mxu0 %v245
    %668 = vmatprep.subr.mxu0 %v244
    %669 = vmatpush1.msra.mxu0 %v243
    %670 = vmatprep.subr.mxu0 %v242
    %671 = vmatpush1.msra.mxu0 %v241
    %672 = vmatprep.subr.mxu0 %v240
    %673 = vmatpush1.msra.mxu0 %v239
    %674 = vmatprep.subr.mxu0 %v238
    %675 = vmatpush1.msra.mxu0 %v237
    %676 = vmatprep.subr.mxu0 %v236
    %677 = vmatpush1.msra.mxu0 %v235
    %678 = vmatprep.subr.mxu0 %v234
    %679 = vmatpush1.msra.mxu0 %v233
    %680 = vmatprep.subr.mxu0 %v232
    %681 = vmatpush1.msra.mxu0 %v231
    %682 = vmatprep.subr.mxu0 0.0
    %683 = vmatpush2.msra.mxu0 0.0
    %684 = vmatprep.subr.mxu0 0.0
    %685 = vmatpush2.msra.mxu0 0.0
    %686 = vmatprep.subr.mxu0 0.0
    %687 = vmatpush2.msra.mxu0 0.0
    %688 = vmatprep.subr.mxu0 0.0
    %689 = vmatpush2.msra.mxu0 0.0
    %690 = vmatprep.subr.mxu0 0.0
    %691 = vmatpush2.msra.mxu0 0.0
    %692 = vmatprep.subr.mxu0 0.0
    %693 = vmatpush2.msra.mxu0 0.0
    %694 = vmatprep.subr.mxu0 0.0
    %695 = vmatpush2.msra.mxu0 0.0
    %696 = vmatprep.subr.mxu0 0.0
    %697 = vmatpush2.msra.mxu0 0.0
    %698 = vmatprep.subr.mxu0 0.0
    %699 = vmatpush2.msra.mxu0 0.0
    %700 = vmatprep.subr.mxu0 0.0
    %701 = vmatpush2.msra.mxu0 0.0
    %702 = vmatprep.subr.mxu0 0.0
    %703 = vmatpush2.msra.mxu0 0.0
    %704 = vmatprep.subr.mxu0 0.0
    %705 = vmatpush2.msra.mxu0 0.0
    %706 = vmatprep.subr.mxu0 0.0
    %707 = vmatpush2.msra.mxu0 0.0
    %708 = vmatprep.subr.mxu0 0.0
    %709 = vmatpush2.msra.mxu0 0.0
    %710 = vmatprep.subr.mxu0 0.0
    %711 = vmatpush2.msra.mxu0 0.0
    %712 = vmatprep.subr.mxu0 0.0
    %713 = vmatpush2.msra.mxu0 0.0
    %714 = vmatprep.mubr.f32.mxu0 0.0
    %715 = vmatmul.mubr.f32.gmra.mxu0 %v648
    %v716 = vpop.f32.mrf.mxu0
    %v717 = vadd.f32 0.0, %v716
    %v718 = vpop.f32.mrf.mxu0
    %v719 = vadd.f32 0.0, %v718
    %720 = vdwg.mxu0
    %v721 = vadd.f32 %v209, %v717
    %v722 = vxor.u32 %v721, 2147483648
    %v723 = vmul.f32 %v722, 1.442695
    %v724 = vpow.pop %v723
    %v725 = vadd.f32 %v724, 1.0
    %v726 = vrcp.pop %v725
    %v727 = vmul.f32 1.0, %v726
    %v728 = vadd.f32 %v719, %v252
    %v729 = vmul.f32 %v727, %v728
    %v730 = vadd.f32 %v211, %v729
    %v731 = vtanh.pop %v730
    %v732 = vsub.f32 %v644, %v731
    %734 = vrot.lane.b32.xlu0 %v732, 64
    %v735 = vpop.permute.xlu0 %734
    %v737 = vmul.f32 %v727, %v735
    %739 = vrot.lane.b32.xlu0 %v737, 64
    %v740 = vpop.permute.xlu0 %739
    %v742 = vadd.f32 %v731, %v740
    %743 = vst.msk [vmem:[#allocation2 + $0x20] sm:$0xff] %vm254, %v742
    %744 = vst.msk [vmem:[#allocation3 + $0x18] sm:$0xff] %vm254, %v742
    %v746 = vsel %vm254, %v742, 0
    %748 = vmatprep.subr.mxu0 0.0
    %749 = vmatpush1.msra.mxu0 0.0
    %750 = vmatprep.subr.mxu0 0.0
    %751 = vmatpush1.msra.mxu0 0.0
    %752 = vmatprep.subr.mxu0 0.0
    %753 = vmatpush1.msra.mxu0 0.0
    %754 = vmatprep.subr.mxu0 0.0
    %755 = vmatpush1.msra.mxu0 0.0
    %756 = vmatprep.subr.mxu0 0.0
    %757 = vmatpush1.msra.mxu0 0.0
    %758 = vmatprep.subr.mxu0 0.0
    %759 = vmatpush1.msra.mxu0 0.0
    %760 = vmatprep.subr.mxu0 0.0
    %761 = vmatpush1.msra.mxu0 0.0
    %762 = vmatprep.subr.mxu0 0.0
    %763 = vmatpush1.msra.mxu0 0.0
    %764 = vmatprep.subr.mxu0 %v246
    %765 = vmatpush1.msra.mxu0 %v245
    %766 = vmatprep.subr.mxu0 %v244
    %767 = vmatpush1.msra.mxu0 %v243
    %768 = vmatprep.subr.mxu0 %v242
    %769 = vmatpush1.msra.mxu0 %v241
    %770 = vmatprep.subr.mxu0 %v240
    %771 = vmatpush1.msra.mxu0 %v239
    %772 = vmatprep.subr.mxu0 %v238
    %773 = vmatpush1.msra.mxu0 %v237
    %774 = vmatprep.subr.mxu0 %v236
    %775 = vmatpush1.msra.mxu0 %v235
    %776 = vmatprep.subr.mxu0 %v234
    %777 = vmatpush1.msra.mxu0 %v233
    %778 = vmatprep.subr.mxu0 %v232
    %779 = vmatpush1.msra.mxu0 %v231
    %780 = vmatprep.subr.mxu0 0.0
    %781 = vmatpush2.msra.mxu0 0.0
    %782 = vmatprep.subr.mxu0 0.0
    %783 = vmatpush2.msra.mxu0 0.0
    %784 = vmatprep.subr.mxu0 0.0
    %785 = vmatpush2.msra.mxu0 0.0
    %786 = vmatprep.subr.mxu0 0.0
    %787 = vmatpush2.msra.mxu0 0.0
    %788 = vmatprep.subr.mxu0 0.0
    %789 = vmatpush2.msra.mxu0 0.0
    %790 = vmatprep.subr.mxu0 0.0
    %791 = vmatpush2.msra.mxu0 0.0
    %792 = vmatprep.subr.mxu0 0.0
    %793 = vmatpush2.msra.mxu0 0.0
    %794 = vmatprep.subr.mxu0 0.0
    %795 = vmatpush2.msra.mxu0 0.0
    %796 = vmatprep.subr.mxu0 0.0
    %797 = vmatpush2.msra.mxu0 0.0
    %798 = vmatprep.subr.mxu0 0.0
    %799 = vmatpush2.msra.mxu0 0.0
    %800 = vmatprep.subr.mxu0 0.0
    %801 = vmatpush2.msra.mxu0 0.0
    %802 = vmatprep.subr.mxu0 0.0
    %803 = vmatpush2.msra.mxu0 0.0
    %804 = vmatprep.subr.mxu0 0.0
    %805 = vmatpush2.msra.mxu0 0.0
    %806 = vmatprep.subr.mxu0 0.0
    %807 = vmatpush2.msra.mxu0 0.0
    %808 = vmatprep.subr.mxu0 0.0
    %809 = vmatpush2.msra.mxu0 0.0
    %810 = vmatprep.subr.mxu0 0.0
    %811 = vmatpush2.msra.mxu0 0.0
    %812 = vmatprep.mubr.f32.mxu0 0.0
    %813 = vmatmul.mubr.f32.gmra.mxu0 %v746
    %v814 = vpop.f32.mrf.mxu0
    %v815 = vadd.f32 0.0, %v814
    %v816 = vpop.f32.mrf.mxu0
    %v817 = vadd.f32 0.0, %v816
    %818 = vdwg.mxu0
    %v819 = vadd.f32 %v215, %v815
    %v820 = vxor.u32 %v819, 2147483648
    %v821 = vmul.f32 %v820, 1.442695
    %v822 = vpow.pop %v821
    %v823 = vadd.f32 %v822, 1.0
    %v824 = vrcp.pop %v823
    %v825 = vmul.f32 1.0, %v824
    %v826 = vadd.f32 %v817, %v252
    %v827 = vmul.f32 %v825, %v826
    %v828 = vadd.f32 %v217, %v827
    %v829 = vtanh.pop %v828
    %v830 = vsub.f32 %v742, %v829
    %832 = vrot.lane.b32.xlu0 %v830, 64
    %v833 = vpop.permute.xlu0 %832
    %v835 = vmul.f32 %v825, %v833
    %837 = vrot.lane.b32.xlu0 %v835, 64
    %v838 = vpop.permute.xlu0 %837
    %v840 = vadd.f32 %v829, %v838
    %841 = vst.msk [vmem:[#allocation2 + $0x28] sm:$0xff] %vm254, %v840
    %842 = vst.msk [vmem:[#allocation3 + $0x10] sm:$0xff] %vm254, %v840
    %v844 = vsel %vm254, %v840, 0
    %846 = vmatprep.subr.mxu0 0.0
    %847 = vmatpush1.msra.mxu0 0.0
    %848 = vmatprep.subr.mxu0 0.0
    %849 = vmatpush1.msra.mxu0 0.0
    %850 = vmatprep.subr.mxu0 0.0
    %851 = vmatpush1.msra.mxu0 0.0
    %852 = vmatprep.subr.mxu0 0.0
    %853 = vmatpush1.msra.mxu0 0.0
    %854 = vmatprep.subr.mxu0 0.0
    %855 = vmatpush1.msra.mxu0 0.0
    %856 = vmatprep.subr.mxu0 0.0
    %857 = vmatpush1.msra.mxu0 0.0
    %858 = vmatprep.subr.mxu0 0.0
    %859 = vmatpush1.msra.mxu0 0.0
    %860 = vmatprep.subr.mxu0 0.0
    %861 = vmatpush1.msra.mxu0 0.0
    %862 = vmatprep.subr.mxu0 %v246
    %863 = vmatpush1.msra.mxu0 %v245
    %864 = vmatprep.subr.mxu0 %v244
    %865 = vmatpush1.msra.mxu0 %v243
    %866 = vmatprep.subr.mxu0 %v242
    %867 = vmatpush1.msra.mxu0 %v241
    %868 = vmatprep.subr.mxu0 %v240
    %869 = vmatpush1.msra.mxu0 %v239
    %870 = vmatprep.subr.mxu0 %v238
    %871 = vmatpush1.msra.mxu0 %v237
    %872 = vmatprep.subr.mxu0 %v236
    %873 = vmatpush1.msra.mxu0 %v235
    %874 = vmatprep.subr.mxu0 %v234
    %875 = vmatpush1.msra.mxu0 %v233
    %876 = vmatprep.subr.mxu0 %v232
    %877 = vmatpush1.msra.mxu0 %v231
    %878 = vmatprep.subr.mxu0 0.0
    %879 = vmatpush2.msra.mxu0 0.0
    %880 = vmatprep.subr.mxu0 0.0
    %881 = vmatpush2.msra.mxu0 0.0
    %882 = vmatprep.subr.mxu0 0.0
    %883 = vmatpush2.msra.mxu0 0.0
    %884 = vmatprep.subr.mxu0 0.0
    %885 = vmatpush2.msra.mxu0 0.0
    %886 = vmatprep.subr.mxu0 0.0
    %887 = vmatpush2.msra.mxu0 0.0
    %888 = vmatprep.subr.mxu0 0.0
    %889 = vmatpush2.msra.mxu0 0.0
    %890 = vmatprep.subr.mxu0 0.0
    %891 = vmatpush2.msra.mxu0 0.0
    %892 = vmatprep.subr.mxu0 0.0
    %893 = vmatpush2.msra.mxu0 0.0
    %894 = vmatprep.subr.mxu0 0.0
    %895 = vmatpush2.msra.mxu0 0.0
    %896 = vmatprep.subr.mxu0 0.0
    %897 = vmatpush2.msra.mxu0 0.0
    %898 = vmatprep.subr.mxu0 0.0
    %899 = vmatpush2.msra.mxu0 0.0
    %900 = vmatprep.subr.mxu0 0.0
    %901 = vmatpush2.msra.mxu0 0.0
    %902 = vmatprep.subr.mxu0 0.0
    %903 = vmatpush2.msra.mxu0 0.0
    %904 = vmatprep.subr.mxu0 0.0
    %905 = vmatpush2.msra.mxu0 0.0
    %906 = vmatprep.subr.mxu0 0.0
    %907 = vmatpush2.msra.mxu0 0.0
    %908 = vmatprep.subr.mxu0 0.0
    %909 = vmatpush2.msra.mxu0 0.0
    %910 = vmatprep.mubr.f32.mxu0 0.0
    %911 = vmatmul.mubr.f32.gmra.mxu0 %v844
    %v912 = vpop.f32.mrf.mxu0
    %v913 = vadd.f32 0.0, %v912
    %v914 = vpop.f32.mrf.mxu0
    %v915 = vadd.f32 0.0, %v914
    %916 = vdwg.mxu0
    %v917 = vadd.f32 %v221, %v913
    %v918 = vxor.u32 %v917, 2147483648
    %v919 = vmul.f32 %v918, 1.442695
    %v920 = vpow.pop %v919
    %v921 = vadd.f32 %v920, 1.0
    %v922 = vrcp.pop %v921
    %v923 = vmul.f32 1.0, %v922
    %v924 = vadd.f32 %v915, %v252
    %v925 = vmul.f32 %v923, %v924
    %v926 = vadd.f32 %v223, %v925
    %v927 = vtanh.pop %v926
    %v928 = vsub.f32 %v840, %v927
    %930 = vrot.lane.b32.xlu0 %v928, 64
    %v931 = vpop.permute.xlu0 %930
    %v933 = vmul.f32 %v923, %v931
    %935 = vrot.lane.b32.xlu0 %v933, 64
    %v936 = vpop.permute.xlu0 %935
    %v938 = vadd.f32 %v927, %v936
    %939 = vst.msk [vmem:[#allocation2 + $0x30] sm:$0xff] %vm254, %v938
    %940 = vst.msk [vmem:[#allocation3 + $0x8] sm:$0xff] %vm254, %v938
    %v942 = vsel %vm254, %v938, 0
    %944 = vmatprep.subr.mxu0 0.0
    %945 = vmatpush1.msra.mxu0 0.0
    %946 = vmatprep.subr.mxu0 0.0
    %947 = vmatpush1.msra.mxu0 0.0
    %948 = vmatprep.subr.mxu0 0.0
    %949 = vmatpush1.msra.mxu0 0.0
    %950 = vmatprep.subr.mxu0 0.0
    %951 = vmatpush1.msra.mxu0 0.0
    %952 = vmatprep.subr.mxu0 0.0
    %953 = vmatpush1.msra.mxu0 0.0
    %954 = vmatprep.subr.mxu0 0.0
    %955 = vmatpush1.msra.mxu0 0.0
    %956 = vmatprep.subr.mxu0 0.0
    %957 = vmatpush1.msra.mxu0 0.0
    %958 = vmatprep.subr.mxu0 0.0
    %959 = vmatpush1.msra.mxu0 0.0
    %960 = vmatprep.subr.mxu0 %v246
    %961 = vmatpush1.msra.mxu0 %v245
    %962 = vmatprep.subr.mxu0 %v244
    %963 = vmatpush1.msra.mxu0 %v243
    %964 = vmatprep.subr.mxu0 %v242
    %965 = vmatpush1.msra.mxu0 %v241
    %966 = vmatprep.subr.mxu0 %v240
    %967 = vmatpush1.msra.mxu0 %v239
    %968 = vmatprep.subr.mxu0 %v238
    %969 = vmatpush1.msra.mxu0 %v237
    %970 = vmatprep.subr.mxu0 %v236
    %971 = vmatpush1.msra.mxu0 %v235
    %972 = vmatprep.subr.mxu0 %v234
    %973 = vmatpush1.msra.mxu0 %v233
    %974 = vmatprep.subr.mxu0 %v232
    %975 = vmatpush1.msra.mxu0 %v231
    %976 = vmatprep.subr.mxu0 0.0
    %977 = vmatpush2.msra.mxu0 0.0
    %978 = vmatprep.subr.mxu0 0.0
    %979 = vmatpush2.msra.mxu0 0.0
    %980 = vmatprep.subr.mxu0 0.0
    %981 = vmatpush2.msra.mxu0 0.0
    %982 = vmatprep.subr.mxu0 0.0
    %983 = vmatpush2.msra.mxu0 0.0
    %984 = vmatprep.subr.mxu0 0.0
    %985 = vmatpush2.msra.mxu0 0.0
    %986 = vmatprep.subr.mxu0 0.0
    %987 = vmatpush2.msra.mxu0 0.0
    %988 = vmatprep.subr.mxu0 0.0
    %989 = vmatpush2.msra.mxu0 0.0
    %990 = vmatprep.subr.mxu0 0.0
    %991 = vmatpush2.msra.mxu0 0.0
    %992 = vmatprep.subr.mxu0 0.0
    %993 = vmatpush2.msra.mxu0 0.0
    %994 = vmatprep.subr.mxu0 0.0
    %995 = vmatpush2.msra.mxu0 0.0
    %996 = vmatprep.subr.mxu0 0.0
    %997 = vmatpush2.msra.mxu0 0.0
    %998 = vmatprep.subr.mxu0 0.0
    %999 = vmatpush2.msra.mxu0 0.0
    %1000 = vmatprep.subr.mxu0 0.0
    %1001 = vmatpush2.msra.mxu0 0.0
    %1002 = vmatprep.subr.mxu0 0.0
    %1003 = vmatpush2.msra.mxu0 0.0
    %1004 = vmatprep.subr.mxu0 0.0
    %1005 = vmatpush2.msra.mxu0 0.0
    %1006 = vmatprep.subr.mxu0 0.0
    %1007 = vmatpush2.msra.mxu0 0.0
    %1008 = vmatprep.mubr.f32.mxu0 0.0
    %1009 = vmatmul.mubr.f32.gmra.mxu0 %v942
    %v1010 = vpop.f32.mrf.mxu0
    %v1011 = vadd.f32 0.0, %v1010
    %v1012 = vpop.f32.mrf.mxu0
    %v1013 = vadd.f32 0.0, %v1012
    %1014 = vdwg.mxu0
    %v1015 = vadd.f32 %v227, %v1011
    %v1016 = vxor.u32 %v1015, 2147483648
    %v1017 = vmul.f32 %v1016, 1.442695
    %v1018 = vpow.pop %v1017
    %v1019 = vadd.f32 %v1018, 1.0
    %v1020 = vrcp.pop %v1019
    %v1021 = vmul.f32 1.0, %v1020
    %v1022 = vadd.f32 %v1013, %v252
    %v1023 = vmul.f32 %v1021, %v1022
    %v1024 = vadd.f32 %v229, %v1023
    %v1025 = vtanh.pop %v1024
    %v1026 = vsub.f32 %v938, %v1025
    %1028 = vrot.lane.b32.xlu0 %v1026, 64
    %v1029 = vpop.permute.xlu0 %1028
    %v1031 = vmul.f32 %v1021, %v1029
    %1033 = vrot.lane.b32.xlu0 %v1031, 64
    %v1034 = vpop.permute.xlu0 %1033
    %v1036 = vadd.f32 %v1025, %v1034
    %1037 = vst.msk [vmem:[#allocation2 + $0x38] sm:$0xff] %vm254, %v1036
    %1038 = vst.msk [vmem:[#allocation3] sm:$0xff] %vm254, %v1036
    %v1039 = vld [vmem:[#allocation2] sm:$0xff]
    %v1040 = vld [vmem:[#allocation2 + $0x8] sm:$0xff]
    %v1041 = vld [vmem:[#allocation2 + $0x10] sm:$0xff]
    %v1042 = vld [vmem:[#allocation2 + $0x18] sm:$0xff]
    %v1043 = vld [vmem:[#allocation2 + $0x20] sm:$0xff]
    %v1044 = vld [vmem:[#allocation2 + $0x28] sm:$0xff]
    %v1045 = vld [vmem:[#allocation2 + $0x30] sm:$0xff]
    %v1046 = vld [vmem:[#allocation2 + $0x38] sm:$0xff]
    %v1047 = vld [vmem:[%s5] sm:$0xff]
    %v1048 = vld [vmem:[%s5 + $0x8] sm:$0xff]
    %v1049 = vld [vmem:[%s5 + $0x10] sm:$0xff]
    %v1050 = vld [vmem:[%s5 + $0x18] sm:$0xff]
    %v1051 = vld [vmem:[%s5 + $0x20] sm:$0xff]
    %v1052 = vld [vmem:[%s5 + $0x28] sm:$0xff]
    %v1053 = vld [vmem:[%s5 + $0x30] sm:$0xff]
    %v1054 = vld [vmem:[%s5 + $0x38] sm:$0xff]
    %v1055 = vld [vmem:[%s5 + $0x40] sm:$0xff]
    %v1056 = vld [vmem:[%s5 + $0x48] sm:$0xff]
    %v1057 = vld [vmem:[%s5 + $0x50] sm:$0xff]
    %v1058 = vld [vmem:[%s5 + $0x58] sm:$0xff]
    %v1059 = vld [vmem:[%s5 + $0x60] sm:$0xff]
    %v1060 = vld [vmem:[%s5 + $0x68] sm:$0xff]
    %v1061 = vld [vmem:[%s5 + $0x70] sm:$0xff]
    %v1062 = vld [vmem:[%s5 + $0x78] sm:$0xff]
    %v1063 = vld [vmem:[#allocation3] sm:$0xff]
    %v1064 = vld [vmem:[#allocation3 + $0x8] sm:$0xff]
    %v1065 = vld [vmem:[#allocation3 + $0x10] sm:$0xff]
    %v1066 = vld [vmem:[#allocation3 + $0x18] sm:$0xff]
    %v1067 = vld [vmem:[#allocation3 + $0x20] sm:$0xff]
    %v1068 = vld [vmem:[#allocation3 + $0x28] sm:$0xff]
    %v1069 = vld [vmem:[#allocation3 + $0x30] sm:$0xff]
    %v1070 = vld [vmem:[#allocation3 + $0x38] sm:$0xff]
    %v1071 = vld [vmem:[#allocation5] sm:$0xff]
    %v1072 = vld [vmem:[#allocation5 + $0x8] sm:$0xff]
    %v1073 = vld [vmem:[#allocation5 + $0x10] sm:$0xff]
    %v1074 = vld [vmem:[#allocation5 + $0x18] sm:$0xff]
    %v1075 = vld [vmem:[#allocation5 + $0x20] sm:$0xff]
    %v1076 = vld [vmem:[#allocation5 + $0x28] sm:$0xff]
    %v1077 = vld [vmem:[#allocation5 + $0x30] sm:$0xff]
    %v1078 = vld [vmem:[#allocation5 + $0x38] sm:$0xff]
    %v1079 = vld [vmem:[#allocation5 + $0x40] sm:$0xff]
    %v1080 = vld [vmem:[#allocation5 + $0x48] sm:$0xff]
    %v1081 = vld [vmem:[#allocation5 + $0x50] sm:$0xff]
    %v1082 = vld [vmem:[#allocation5 + $0x58] sm:$0xff]
    %v1083 = vld [vmem:[#allocation5 + $0x60] sm:$0xff]
    %v1084 = vld [vmem:[#allocation5 + $0x68] sm:$0xff]
    %v1085 = vld [vmem:[#allocation5 + $0x70] sm:$0xff]
    %v1086 = vld [vmem:[#allocation5 + $0x78] sm:$0xff]
    %v1088 = vsel %vm254, %v1063, 0
    %v1091 = vsel %vm254, %v1064, 0
    %v1094 = vsel %vm254, %v1065, 0
    %v1097 = vsel %vm254, %v1066, 0
    %v1100 = vsel %vm254, %v1067, 0
    %v1103 = vsel %vm254, %v1068, 0
    %v1106 = vsel %vm254, %v1069, 0
    %v1109 = vsel %vm254, %v1070, 0
    %1111 = vmatprep.subr.mxu0 0.0
    %1112 = vmatpush1.msra.mxu0 0.0
    %1113 = vmatprep.subr.mxu0 0.0
    %1114 = vmatpush1.msra.mxu0 0.0
    %1115 = vmatprep.subr.mxu0 0.0
    %1116 = vmatpush1.msra.mxu0 0.0
    %1117 = vmatprep.subr.mxu0 0.0
    %1118 = vmatpush1.msra.mxu0 0.0
    %1119 = vmatprep.subr.mxu0 0.0
    %1120 = vmatpush1.msra.mxu0 0.0
    %1121 = vmatprep.subr.mxu0 0.0
    %1122 = vmatpush1.msra.mxu0 0.0
    %1123 = vmatprep.subr.mxu0 0.0
    %1124 = vmatpush1.msra.mxu0 0.0
    %1125 = vmatprep.subr.mxu0 0.0
    %1126 = vmatpush1.msra.mxu0 0.0
    %1127 = vmatprep.subr.mxu0 %v1086
    %1128 = vmatpush1.msra.mxu0 %v1085
    %1129 = vmatprep.subr.mxu0 %v1084
    %1130 = vmatpush1.msra.mxu0 %v1083
    %1131 = vmatprep.subr.mxu0 %v1082
    %1132 = vmatpush1.msra.mxu0 %v1081
    %1133 = vmatprep.subr.mxu0 %v1080
    %1134 = vmatpush1.msra.mxu0 %v1079
    %1135 = vmatprep.subr.mxu0 %v1078
    %1136 = vmatpush1.msra.mxu0 %v1077
    %1137 = vmatprep.subr.mxu0 %v1076
    %1138 = vmatpush1.msra.mxu0 %v1075
    %1139 = vmatprep.subr.mxu0 %v1074
    %1140 = vmatpush1.msra.mxu0 %v1073
    %1141 = vmatprep.subr.mxu0 %v1072
    %1142 = vmatpush1.msra.mxu0 %v1071
    %1143 = vmatprep.subr.mxu0 0.0
    %1144 = vmatpush2.msra.mxu0 0.0
    %1145 = vmatprep.subr.mxu0 0.0
    %1146 = vmatpush2.msra.mxu0 0.0
    %1147 = vmatprep.subr.mxu0 0.0
    %1148 = vmatpush2.msra.mxu0 0.0
    %1149 = vmatprep.subr.mxu0 0.0
    %1150 = vmatpush2.msra.mxu0 0.0
    %1151 = vmatprep.subr.mxu0 0.0
    %1152 = vmatpush2.msra.mxu0 0.0
    %1153 = vmatprep.subr.mxu0 0.0
    %1154 = vmatpush2.msra.mxu0 0.0
    %1155 = vmatprep.subr.mxu0 0.0
    %1156 = vmatpush2.msra.mxu0 0.0
    %1157 = vmatprep.subr.mxu0 0.0
    %1158 = vmatpush2.msra.mxu0 0.0
    %1159 = vmatprep.subr.mxu0 0.0
    %1160 = vmatpush2.msra.mxu0 0.0
    %1161 = vmatprep.subr.mxu0 0.0
    %1162 = vmatpush2.msra.mxu0 0.0
    %1163 = vmatprep.subr.mxu0 0.0
    %1164 = vmatpush2.msra.mxu0 0.0
    %1165 = vmatprep.subr.mxu0 0.0
    %1166 = vmatpush2.msra.mxu0 0.0
    %1167 = vmatprep.subr.mxu0 0.0
    %1168 = vmatpush2.msra.mxu0 0.0
    %1169 = vmatprep.subr.mxu0 0.0
    %1170 = vmatpush2.msra.mxu0 0.0
    %1171 = vmatprep.subr.mxu0 0.0
    %1172 = vmatpush2.msra.mxu0 0.0
    %1173 = vmatprep.subr.mxu0 0.0
    %1174 = vmatpush2.msra.mxu0 0.0
    %1175 = vmatprep.mubr.f32.mxu0 0.0
    %1176 = vmatmul.mubr.f32.gmra.mxu0 %v1088
    %v1177 = vpop.f32.mrf.mxu0
    %v1178 = vadd.f32 0.0, %v1177
    %v1179 = vpop.f32.mrf.mxu0
    %v1180 = vadd.f32 0.0, %v1179
    %1181 = vmatprep.mubr.f32.mxu0 0.0
    %1182 = vmatmul.mubr.f32.gmra.mxu0 %v1091
    %v1183 = vpop.f32.mrf.mxu0
    %v1184 = vadd.f32 0.0, %v1183
    %v1185 = vpop.f32.mrf.mxu0
    %v1186 = vadd.f32 0.0, %v1185
    %1187 = vmatprep.mubr.f32.mxu0 0.0
    %1188 = vmatmul.mubr.f32.gmra.mxu0 %v1094
    %v1189 = vpop.f32.mrf.mxu0
    %v1190 = vadd.f32 0.0, %v1189
    %v1191 = vpop.f32.mrf.mxu0
    %v1192 = vadd.f32 0.0, %v1191
    %1193 = vmatprep.mubr.f32.mxu0 0.0
    %1194 = vmatmul.mubr.f32.gmra.mxu0 %v1097
    %v1195 = vpop.f32.mrf.mxu0
    %v1196 = vadd.f32 0.0, %v1195
    %v1197 = vpop.f32.mrf.mxu0
    %v1198 = vadd.f32 0.0, %v1197
    %1199 = vmatprep.mubr.f32.mxu0 0.0
    %1200 = vmatmul.mubr.f32.gmra.mxu0 %v1100
    %v1201 = vpop.f32.mrf.mxu0
    %v1202 = vadd.f32 0.0, %v1201
    %v1203 = vpop.f32.mrf.mxu0
    %v1204 = vadd.f32 0.0, %v1203
    %1205 = vmatprep.mubr.f32.mxu0 0.0
    %1206 = vmatmul.mubr.f32.gmra.mxu0 %v1103
    %v1207 = vpop.f32.mrf.mxu0
    %v1208 = vadd.f32 0.0, %v1207
    %v1209 = vpop.f32.mrf.mxu0
    %v1210 = vadd.f32 0.0, %v1209
    %1211 = vmatprep.mubr.f32.mxu0 0.0
    %1212 = vmatmul.mubr.f32.gmra.mxu0 %v1106
    %v1213 = vpop.f32.mrf.mxu0
    %v1214 = vadd.f32 0.0, %v1213
    %v1215 = vpop.f32.mrf.mxu0
    %v1216 = vadd.f32 0.0, %v1215
    %1217 = vmatprep.mubr.f32.mxu0 0.0
    %1218 = vmatmul.mubr.f32.gmra.mxu0 %v1109
    %v1219 = vpop.f32.mrf.mxu0
    %v1220 = vadd.f32 0.0, %v1219
    %v1221 = vpop.f32.mrf.mxu0
    %v1222 = vadd.f32 0.0, %v1221
    %1223 = vdwg.mxu0
    %v1225 = vsel %vm254, %v1039, 0
    %v1228 = vsel %vm254, %v1040, 0
    %v1231 = vsel %vm254, %v1041, 0
    %v1234 = vsel %vm254, %v1042, 0
    %v1237 = vsel %vm254, %v1043, 0
    %v1240 = vsel %vm254, %v1044, 0
    %v1243 = vsel %vm254, %v1045, 0
    %v1246 = vsel %vm254, %v1046, 0
    %1248 = vmatprep.subr.mxu0 0.0
    %1249 = vmatpush1.msra.mxu0 0.0
    %1250 = vmatprep.subr.mxu0 0.0
    %1251 = vmatpush1.msra.mxu0 0.0
    %1252 = vmatprep.subr.mxu0 0.0
    %1253 = vmatpush1.msra.mxu0 0.0
    %1254 = vmatprep.subr.mxu0 0.0
    %1255 = vmatpush1.msra.mxu0 0.0
    %1256 = vmatprep.subr.mxu0 0.0
    %1257 = vmatpush1.msra.mxu0 0.0
    %1258 = vmatprep.subr.mxu0 0.0
    %1259 = vmatpush1.msra.mxu0 0.0
    %1260 = vmatprep.subr.mxu0 0.0
    %1261 = vmatpush1.msra.mxu0 0.0
    %1262 = vmatprep.subr.mxu0 0.0
    %1263 = vmatpush1.msra.mxu0 0.0
    %1264 = vmatprep.subr.mxu0 %v1062
    %1265 = vmatpush1.msra.mxu0 %v1061
    %1266 = vmatprep.subr.mxu0 %v1060
    %1267 = vmatpush1.msra.mxu0 %v1059
    %1268 = vmatprep.subr.mxu0 %v1058
    %1269 = vmatpush1.msra.mxu0 %v1057
    %1270 = vmatprep.subr.mxu0 %v1056
    %1271 = vmatpush1.msra.mxu0 %v1055
    %1272 = vmatprep.subr.mxu0 %v1054
    %1273 = vmatpush1.msra.mxu0 %v1053
    %1274 = vmatprep.subr.mxu0 %v1052
    %1275 = vmatpush1.msra.mxu0 %v1051
    %1276 = vmatprep.subr.mxu0 %v1050
    %1277 = vmatpush1.msra.mxu0 %v1049
    %1278 = vmatprep.subr.mxu0 %v1048
    %1279 = vmatpush1.msra.mxu0 %v1047
    %1280 = vmatprep.subr.mxu0 0.0
    %1281 = vmatpush2.msra.mxu0 0.0
    %1282 = vmatprep.subr.mxu0 0.0
    %1283 = vmatpush2.msra.mxu0 0.0
    %1284 = vmatprep.subr.mxu0 0.0
    %1285 = vmatpush2.msra.mxu0 0.0
    %1286 = vmatprep.subr.mxu0 0.0
    %1287 = vmatpush2.msra.mxu0 0.0
    %1288 = vmatprep.subr.mxu0 0.0
    %1289 = vmatpush2.msra.mxu0 0.0
    %1290 = vmatprep.subr.mxu0 0.0
    %1291 = vmatpush2.msra.mxu0 0.0
    %1292 = vmatprep.subr.mxu0 0.0
    %1293 = vmatpush2.msra.mxu0 0.0
    %1294 = vmatprep.subr.mxu0 0.0
    %1295 = vmatpush2.msra.mxu0 0.0
    %1296 = vmatprep.subr.mxu0 0.0
    %1297 = vmatpush2.msra.mxu0 0.0
    %1298 = vmatprep.subr.mxu0 0.0
    %1299 = vmatpush2.msra.mxu0 0.0
    %1300 = vmatprep.subr.mxu0 0.0
    %1301 = vmatpush2.msra.mxu0 0.0
    %1302 = vmatprep.subr.mxu0 0.0
    %1303 = vmatpush2.msra.mxu0 0.0
    %1304 = vmatprep.subr.mxu0 0.0
    %1305 = vmatpush2.msra.mxu0 0.0
    %1306 = vmatprep.subr.mxu0 0.0
    %1307 = vmatpush2.msra.mxu0 0.0
    %1308 = vmatprep.subr.mxu0 0.0
    %1309 = vmatpush2.msra.mxu0 0.0
    %1310 = vmatprep.subr.mxu0 0.0
    %1311 = vmatpush2.msra.mxu0 0.0
    %1312 = vmatprep.mubr.f32.mxu0 0.0
    %1313 = vmatmul.mubr.f32.gmra.mxu0 %v1225
    %v1314 = vpop.f32.mrf.mxu0
    %v1315 = vadd.f32 %v1178, %v1314
    %v1316 = vpop.f32.mrf.mxu0
    %v1317 = vadd.f32 %v1180, %v1316
    %1318 = vmatprep.mubr.f32.mxu0 0.0
    %1319 = vmatmul.mubr.f32.gmra.mxu0 %v1228
    %v1320 = vpop.f32.mrf.mxu0
    %v1321 = vadd.f32 %v1184, %v1320
    %v1322 = vpop.f32.mrf.mxu0
    %v1323 = vadd.f32 %v1186, %v1322
    %1324 = vmatprep.mubr.f32.mxu0 0.0
    %1325 = vmatmul.mubr.f32.gmra.mxu0 %v1231
    %v1326 = vpop.f32.mrf.mxu0
    %v1327 = vadd.f32 %v1190, %v1326
    %v1328 = vpop.f32.mrf.mxu0
    %v1329 = vadd.f32 %v1192, %v1328
    %1330 = vmatprep.mubr.f32.mxu0 0.0
    %1331 = vmatmul.mubr.f32.gmra.mxu0 %v1234
    %v1332 = vpop.f32.mrf.mxu0
    %v1333 = vadd.f32 %v1196, %v1332
    %v1334 = vpop.f32.mrf.mxu0
    %v1335 = vadd.f32 %v1198, %v1334
    %1336 = vmatprep.mubr.f32.mxu0 0.0
    %1337 = vmatmul.mubr.f32.gmra.mxu0 %v1237
    %v1338 = vpop.f32.mrf.mxu0
    %v1339 = vadd.f32 %v1202, %v1338
    %v1340 = vpop.f32.mrf.mxu0
    %v1341 = vadd.f32 %v1204, %v1340
    %1342 = vmatprep.mubr.f32.mxu0 0.0
    %1343 = vmatmul.mubr.f32.gmra.mxu0 %v1240
    %v1344 = vpop.f32.mrf.mxu0
    %v1345 = vadd.f32 %v1208, %v1344
    %v1346 = vpop.f32.mrf.mxu0
    %v1347 = vadd.f32 %v1210, %v1346
    %1348 = vmatprep.mubr.f32.mxu0 0.0
    %1349 = vmatmul.mubr.f32.gmra.mxu0 %v1243
    %v1350 = vpop.f32.mrf.mxu0
    %v1351 = vadd.f32 %v1214, %v1350
    %v1352 = vpop.f32.mrf.mxu0
    %v1353 = vadd.f32 %v1216, %v1352
    %1354 = vmatprep.mubr.f32.mxu0 0.0
    %1355 = vmatmul.mubr.f32.gmra.mxu0 %v1246
    %v1356 = vpop.f32.mrf.mxu0
    %v1357 = vadd.f32 %v1220, %v1356
    %v1358 = vpop.f32.mrf.mxu0
    %v1359 = vadd.f32 %v1222, %v1358
    %1360 = vdwg.mxu0
    %v1361 = vld [vmem:[%s7] sm:$0x3]
    %v1363 = vlaneseq
    %v1364 = vshrl.u32 %v1363, 7
    %v1365 = vsub.s32 0, %v1364
    %v1366 = vrot.slane %v1361, %v1365
    %v1367 = vlaneseq
    %v1368 = vshrl.u32 %v1367, 7
    %v1369 = vsub.s32 1, %v1368
    %v1370 = vrot.slane %v1361, %v1369
    %v1373 = vadd.f32 %v1315, %v1366
    %v1374 = vadd.f32 %v1317, %v1370
    %v1375 = vadd.f32 %v1321, %v1366
    %v1376 = vadd.f32 %v1323, %v1370
    %v1377 = vadd.f32 %v1327, %v1366
    %v1378 = vadd.f32 %v1329, %v1370
    %v1379 = vadd.f32 %v1333, %v1366
    %v1380 = vadd.f32 %v1335, %v1370
    %v1381 = vadd.f32 %v1339, %v1366
    %v1382 = vadd.f32 %v1341, %v1370
    %v1383 = vadd.f32 %v1345, %v1366
    %v1384 = vadd.f32 %v1347, %v1370
    %v1385 = vadd.f32 %v1351, %v1366
    %v1386 = vadd.f32 %v1353, %v1370
    %v1387 = vadd.f32 %v1357, %v1366
    %v1388 = vadd.f32 %v1359, %v1370
    %v1389 = vld [vmem:[#allocation7] sm:$0xff]
    %v1390 = vld [vmem:[#allocation7 + $0x8] sm:$0xff]
    %v1391 = vld [vmem:[#allocation7 + $0x10] sm:$0xff]
    %v1392 = vld [vmem:[#allocation7 + $0x18] sm:$0xff]
    %v1393 = vld [vmem:[#allocation7 + $0x20] sm:$0xff]
    %v1394 = vld [vmem:[#allocation7 + $0x28] sm:$0xff]
    %v1395 = vld [vmem:[#allocation7 + $0x30] sm:$0xff]
    %v1396 = vld [vmem:[#allocation7 + $0x38] sm:$0xff]
    %v1397 = vld [vmem:[#allocation7 + $0x40] sm:$0xff]
    %v1398 = vld [vmem:[#allocation7 + $0x48] sm:$0xff]
    %v1399 = vld [vmem:[#allocation7 + $0x50] sm:$0xff]
    %v1400 = vld [vmem:[#allocation7 + $0x58] sm:$0xff]
    %v1401 = vld [vmem:[#allocation7 + $0x60] sm:$0xff]
    %v1402 = vld [vmem:[#allocation7 + $0x68] sm:$0xff]
    %v1403 = vld [vmem:[#allocation7 + $0x70] sm:$0xff]
    %v1404 = vld [vmem:[#allocation7 + $0x78] sm:$0xff]
    %v1405 = vld [vmem:[%s9] sm:$0x1]
    %v1407 = vlaneseq
    %v1408 = vshrl.u32 %v1407, 7
    %v1409 = vsub.s32 0, %v1408
    %v1410 = vrot.slane %v1405, %v1409
    %1412 = vmatprep.subr.mxu0 0.0
    %1413 = vmatpush1.msra.mxu0 0.0
    %1414 = vmatprep.subr.mxu0 0.0
    %1415 = vmatpush1.msra.mxu0 0.0
    %1416 = vmatprep.subr.mxu0 0.0
    %1417 = vmatpush1.msra.mxu0 0.0
    %1418 = vmatprep.subr.mxu0 0.0
    %1419 = vmatpush1.msra.mxu0 0.0
    %1420 = vmatprep.subr.mxu0 0.0
    %1421 = vmatpush1.msra.mxu0 0.0
    %1422 = vmatprep.subr.mxu0 0.0
    %1423 = vmatpush1.msra.mxu0 0.0
    %1424 = vmatprep.subr.mxu0 0.0
    %1425 = vmatpush1.msra.mxu0 0.0
    %1426 = vmatprep.subr.mxu0 0.0
    %1427 = vmatpush1.msra.mxu0 0.0
    %1428 = vmatprep.subr.mxu0 %v1404
    %1429 = vmatpush1.msra.mxu0 %v1403
    %1430 = vmatprep.subr.mxu0 %v1402
    %1431 = vmatpush1.msra.mxu0 %v1401
    %1432 = vmatprep.subr.mxu0 %v1400
    %1433 = vmatpush1.msra.mxu0 %v1399
    %1434 = vmatprep.subr.mxu0 %v1398
    %1435 = vmatpush1.msra.mxu0 %v1397
    %1436 = vmatprep.subr.mxu0 %v1396
    %1437 = vmatpush1.msra.mxu0 %v1395
    %1438 = vmatprep.subr.mxu0 %v1394
    %1439 = vmatpush1.msra.mxu0 %v1393
    %1440 = vmatprep.subr.mxu0 %v1392
    %1441 = vmatpush1.msra.mxu0 %v1391
    %1442 = vmatprep.subr.mxu0 %v1390
    %1443 = vmatpush1.msra.mxu0 %v1389
    %1444 = vmatprep.subr.mxu0 0.0
    %1445 = vmatpush2.msra.mxu0 0.0
    %1446 = vmatprep.subr.mxu0 0.0
    %1447 = vmatpush2.msra.mxu0 0.0
    %1448 = vmatprep.subr.mxu0 0.0
    %1449 = vmatpush2.msra.mxu0 0.0
    %1450 = vmatprep.subr.mxu0 0.0
    %1451 = vmatpush2.msra.mxu0 0.0
    %1452 = vmatprep.subr.mxu0 0.0
    %1453 = vmatpush2.msra.mxu0 0.0
    %1454 = vmatprep.subr.mxu0 0.0
    %1455 = vmatpush2.msra.mxu0 0.0
    %1456 = vmatprep.subr.mxu0 0.0
    %1457 = vmatpush2.msra.mxu0 0.0
    %1458 = vmatprep.subr.mxu0 0.0
    %1459 = vmatpush2.msra.mxu0 0.0
    %1460 = vmatprep.subr.mxu0 0.0
    %1461 = vmatpush2.msra.mxu0 0.0
    %1462 = vmatprep.subr.mxu0 0.0
    %1463 = vmatpush2.msra.mxu0 0.0
    %1464 = vmatprep.subr.mxu0 0.0
    %1465 = vmatpush2.msra.mxu0 0.0
    %1466 = vmatprep.subr.mxu0 0.0
    %1467 = vmatpush2.msra.mxu0 0.0
    %1468 = vmatprep.subr.mxu0 0.0
    %1469 = vmatpush2.msra.mxu0 0.0
    %1470 = vmatprep.subr.mxu0 0.0
    %1471 = vmatpush2.msra.mxu0 0.0
    %1472 = vmatprep.subr.mxu0 0.0
    %1473 = vmatpush2.msra.mxu0 0.0
    %1474 = vmatprep.subr.mxu0 0.0
    %1475 = vmatpush2.msra.mxu0 0.0
    %1476 = vmatprep.mubr.f32.mxu0 0.0
    %1477 = vmatmul.mubr.f32.gmra.mxu0 %v256
    %v1478 = vpop.f32.mrf.mxu0
    %v1479 = vadd.f32 0.0, %v1478
    %v1480 = vpop.f32.mrf.mxu0
    %v1481 = vadd.f32 0.0, %v1480
    %1482 = vdwg.mxu0
    %v1483 = vadd.f32 %v1373, %v1479
    %v1484 = vxor.u32 %v1483, 2147483648
    %v1485 = vmul.f32 %v1484, 1.442695
    %v1486 = vpow.pop %v1485
    %v1487 = vadd.f32 %v1486, 1.0
    %v1488 = vrcp.pop %v1487
    %v1489 = vmul.f32 1.0, %v1488
    %v1490 = vadd.f32 %v1481, %v1410
    %v1491 = vmul.f32 %v1489, %v1490
    %v1492 = vadd.f32 %v1374, %v1491
    %v1493 = vtanh.pop %v1492
    %v1494 = vsub.f32 0.0, %v1493
    %1496 = vrot.lane.b32.xlu0 %v1494, 64
    %v1497 = vpop.permute.xlu0 %1496
    %v1499 = vmul.f32 %v1489, %v1497
    %1501 = vrot.lane.b32.xlu0 %v1499, 64
    %v1502 = vpop.permute.xlu0 %1501
    %v1504 = vadd.f32 %v1493, %v1502
    %v1506 = vsel %vm254, %v1504, 0
    %1508 = vmatprep.subr.mxu0 0.0
    %1509 = vmatpush1.msra.mxu0 0.0
    %1510 = vmatprep.subr.mxu0 0.0
    %1511 = vmatpush1.msra.mxu0 0.0
    %1512 = vmatprep.subr.mxu0 0.0
    %1513 = vmatpush1.msra.mxu0 0.0
    %1514 = vmatprep.subr.mxu0 0.0
    %1515 = vmatpush1.msra.mxu0 0.0
    %1516 = vmatprep.subr.mxu0 0.0
    %1517 = vmatpush1.msra.mxu0 0.0
    %1518 = vmatprep.subr.mxu0 0.0
    %1519 = vmatpush1.msra.mxu0 0.0
    %1520 = vmatprep.subr.mxu0 0.0
    %1521 = vmatpush1.msra.mxu0 0.0
    %1522 = vmatprep.subr.mxu0 0.0
    %1523 = vmatpush1.msra.mxu0 0.0
    %1524 = vmatprep.subr.mxu0 %v1404
    %1525 = vmatpush1.msra.mxu0 %v1403
    %1526 = vmatprep.subr.mxu0 %v1402
    %1527 = vmatpush1.msra.mxu0 %v1401
    %1528 = vmatprep.subr.mxu0 %v1400
    %1529 = vmatpush1.msra.mxu0 %v1399
    %1530 = vmatprep.subr.mxu0 %v1398
    %1531 = vmatpush1.msra.mxu0 %v1397
    %1532 = vmatprep.subr.mxu0 %v1396
    %1533 = vmatpush1.msra.mxu0 %v1395
    %1534 = vmatprep.subr.mxu0 %v1394
    %1535 = vmatpush1.msra.mxu0 %v1393
    %1536 = vmatprep.subr.mxu0 %v1392
    %1537 = vmatpush1.msra.mxu0 %v1391
    %1538 = vmatprep.subr.mxu0 %v1390
    %1539 = vmatpush1.msra.mxu0 %v1389
    %1540 = vmatprep.subr.mxu0 0.0
    %1541 = vmatpush2.msra.mxu0 0.0
    %1542 = vmatprep.subr.mxu0 0.0
    %1543 = vmatpush2.msra.mxu0 0.0
    %1544 = vmatprep.subr.mxu0 0.0
    %1545 = vmatpush2.msra.mxu0 0.0
    %1546 = vmatprep.subr.mxu0 0.0
    %1547 = vmatpush2.msra.mxu0 0.0
    %1548 = vmatprep.subr.mxu0 0.0
    %1549 = vmatpush2.msra.mxu0 0.0
    %1550 = vmatprep.subr.mxu0 0.0
    %1551 = vmatpush2.msra.mxu0 0.0
    %1552 = vmatprep.subr.mxu0 0.0
    %1553 = vmatpush2.msra.mxu0 0.0
    %1554 = vmatprep.subr.mxu0 0.0
    %1555 = vmatpush2.msra.mxu0 0.0
    %1556 = vmatprep.subr.mxu0 0.0
    %1557 = vmatpush2.msra.mxu0 0.0
    %1558 = vmatprep.subr.mxu0 0.0
    %1559 = vmatpush2.msra.mxu0 0.0
    %1560 = vmatprep.subr.mxu0 0.0
    %1561 = vmatpush2.msra.mxu0 0.0
    %1562 = vmatprep.subr.mxu0 0.0
    %1563 = vmatpush2.msra.mxu0 0.0
    %1564 = vmatprep.subr.mxu0 0.0
    %1565 = vmatpush2.msra.mxu0 0.0
    %1566 = vmatprep.subr.mxu0 0.0
    %1567 = vmatpush2.msra.mxu0 0.0
    %1568 = vmatprep.subr.mxu0 0.0
    %1569 = vmatpush2.msra.mxu0 0.0
    %1570 = vmatprep.subr.mxu0 0.0
    %1571 = vmatpush2.msra.mxu0 0.0
    %1572 = vmatprep.mubr.f32.mxu0 0.0
    %1573 = vmatmul.mubr.f32.gmra.mxu0 %v1506
    %v1574 = vpop.f32.mrf.mxu0
    %v1575 = vadd.f32 0.0, %v1574
    %v1576 = vpop.f32.mrf.mxu0
    %v1577 = vadd.f32 0.0, %v1576
    %1578 = vdwg.mxu0
    %v1579 = vadd.f32 %v1375, %v1575
    %v1580 = vxor.u32 %v1579, 2147483648
    %v1581 = vmul.f32 %v1580, 1.442695
    %v1582 = vpow.pop %v1581
    %v1583 = vadd.f32 %v1582, 1.0
    %v1584 = vrcp.pop %v1583
    %v1585 = vmul.f32 1.0, %v1584
    %v1586 = vadd.f32 %v1577, %v1410
    %v1587 = vmul.f32 %v1585, %v1586
    %v1588 = vadd.f32 %v1376, %v1587
    %v1589 = vtanh.pop %v1588
    %v1590 = vsub.f32 %v1504, %v1589
    %1592 = vrot.lane.b32.xlu0 %v1590, 64
    %v1593 = vpop.permute.xlu0 %1592
    %v1595 = vmul.f32 %v1585, %v1593
    %1597 = vrot.lane.b32.xlu0 %v1595, 64
    %v1598 = vpop.permute.xlu0 %1597
    %v1600 = vadd.f32 %v1589, %v1598
    %v1602 = vsel %vm254, %v1600, 0
    %1604 = vmatprep.subr.mxu0 0.0
    %1605 = vmatpush1.msra.mxu0 0.0
    %1606 = vmatprep.subr.mxu0 0.0
    %1607 = vmatpush1.msra.mxu0 0.0
    %1608 = vmatprep.subr.mxu0 0.0
    %1609 = vmatpush1.msra.mxu0 0.0
    %1610 = vmatprep.subr.mxu0 0.0
    %1611 = vmatpush1.msra.mxu0 0.0
    %1612 = vmatprep.subr.mxu0 0.0
    %1613 = vmatpush1.msra.mxu0 0.0
    %1614 = vmatprep.subr.mxu0 0.0
    %1615 = vmatpush1.msra.mxu0 0.0
    %1616 = vmatprep.subr.mxu0 0.0
    %1617 = vmatpush1.msra.mxu0 0.0
    %1618 = vmatprep.subr.mxu0 0.0
    %1619 = vmatpush1.msra.mxu0 0.0
    %1620 = vmatprep.subr.mxu0 %v1404
    %1621 = vmatpush1.msra.mxu0 %v1403
    %1622 = vmatprep.subr.mxu0 %v1402
    %1623 = vmatpush1.msra.mxu0 %v1401
    %1624 = vmatprep.subr.mxu0 %v1400
    %1625 = vmatpush1.msra.mxu0 %v1399
    %1626 = vmatprep.subr.mxu0 %v1398
    %1627 = vmatpush1.msra.mxu0 %v1397
    %1628 = vmatprep.subr.mxu0 %v1396
    %1629 = vmatpush1.msra.mxu0 %v1395
    %1630 = vmatprep.subr.mxu0 %v1394
    %1631 = vmatpush1.msra.mxu0 %v1393
    %1632 = vmatprep.subr.mxu0 %v1392
    %1633 = vmatpush1.msra.mxu0 %v1391
    %1634 = vmatprep.subr.mxu0 %v1390
    %1635 = vmatpush1.msra.mxu0 %v1389
    %1636 = vmatprep.subr.mxu0 0.0
    %1637 = vmatpush2.msra.mxu0 0.0
    %1638 = vmatprep.subr.mxu0 0.0
    %1639 = vmatpush2.msra.mxu0 0.0
    %1640 = vmatprep.subr.mxu0 0.0
    %1641 = vmatpush2.msra.mxu0 0.0
    %1642 = vmatprep.subr.mxu0 0.0
    %1643 = vmatpush2.msra.mxu0 0.0
    %1644 = vmatprep.subr.mxu0 0.0
    %1645 = vmatpush2.msra.mxu0 0.0
    %1646 = vmatprep.subr.mxu0 0.0
    %1647 = vmatpush2.msra.mxu0 0.0
    %1648 = vmatprep.subr.mxu0 0.0
    %1649 = vmatpush2.msra.mxu0 0.0
    %1650 = vmatprep.subr.mxu0 0.0
    %1651 = vmatpush2.msra.mxu0 0.0
    %1652 = vmatprep.subr.mxu0 0.0
    %1653 = vmatpush2.msra.mxu0 0.0
    %1654 = vmatprep.subr.mxu0 0.0
    %1655 = vmatpush2.msra.mxu0 0.0
    %1656 = vmatprep.subr.mxu0 0.0
    %1657 = vmatpush2.msra.mxu0 0.0
    %1658 = vmatprep.subr.mxu0 0.0
    %1659 = vmatpush2.msra.mxu0 0.0
    %1660 = vmatprep.subr.mxu0 0.0
    %1661 = vmatpush2.msra.mxu0 0.0
    %1662 = vmatprep.subr.mxu0 0.0
    %1663 = vmatpush2.msra.mxu0 0.0
    %1664 = vmatprep.subr.mxu0 0.0
    %1665 = vmatpush2.msra.mxu0 0.0
    %1666 = vmatprep.subr.mxu0 0.0
    %1667 = vmatpush2.msra.mxu0 0.0
    %1668 = vmatprep.mubr.f32.mxu0 0.0
    %1669 = vmatmul.mubr.f32.gmra.mxu0 %v1602
    %v1670 = vpop.f32.mrf.mxu0
    %v1671 = vadd.f32 0.0, %v1670
    %v1672 = vpop.f32.mrf.mxu0
    %v1673 = vadd.f32 0.0, %v1672
    %1674 = vdwg.mxu0
    %v1675 = vadd.f32 %v1377, %v1671
    %v1676 = vxor.u32 %v1675, 2147483648
    %v1677 = vmul.f32 %v1676, 1.442695
    %v1678 = vpow.pop %v1677
    %v1679 = vadd.f32 %v1678, 1.0
    %v1680 = vrcp.pop %v1679
    %v1681 = vmul.f32 1.0, %v1680
    %v1682 = vadd.f32 %v1673, %v1410
    %v1683 = vmul.f32 %v1681, %v1682
    %v1684 = vadd.f32 %v1378, %v1683
    %v1685 = vtanh.pop %v1684
    %v1686 = vsub.f32 %v1600, %v1685
    %1688 = vrot.lane.b32.xlu0 %v1686, 64
    %v1689 = vpop.permute.xlu0 %1688
    %v1691 = vmul.f32 %v1681, %v1689
    %1693 = vrot.lane.b32.xlu0 %v1691, 64
    %v1694 = vpop.permute.xlu0 %1693
    %v1696 = vadd.f32 %v1685, %v1694
    %v1698 = vsel %vm254, %v1696, 0
    %1700 = vmatprep.subr.mxu0 0.0
    %1701 = vmatpush1.msra.mxu0 0.0
    %1702 = vmatprep.subr.mxu0 0.0
    %1703 = vmatpush1.msra.mxu0 0.0
    %1704 = vmatprep.subr.mxu0 0.0
    %1705 = vmatpush1.msra.mxu0 0.0
    %1706 = vmatprep.subr.mxu0 0.0
    %1707 = vmatpush1.msra.mxu0 0.0
    %1708 = vmatprep.subr.mxu0 0.0
    %1709 = vmatpush1.msra.mxu0 0.0
    %1710 = vmatprep.subr.mxu0 0.0
    %1711 = vmatpush1.msra.mxu0 0.0
    %1712 = vmatprep.subr.mxu0 0.0
    %1713 = vmatpush1.msra.mxu0 0.0
    %1714 = vmatprep.subr.mxu0 0.0
    %1715 = vmatpush1.msra.mxu0 0.0
    %1716 = vmatprep.subr.mxu0 %v1404
    %1717 = vmatpush1.msra.mxu0 %v1403
    %1718 = vmatprep.subr.mxu0 %v1402
    %1719 = vmatpush1.msra.mxu0 %v1401
    %1720 = vmatprep.subr.mxu0 %v1400
    %1721 = vmatpush1.msra.mxu0 %v1399
    %1722 = vmatprep.subr.mxu0 %v1398
    %1723 = vmatpush1.msra.mxu0 %v1397
    %1724 = vmatprep.subr.mxu0 %v1396
    %1725 = vmatpush1.msra.mxu0 %v1395
    %1726 = vmatprep.subr.mxu0 %v1394
    %1727 = vmatpush1.msra.mxu0 %v1393
    %1728 = vmatprep.subr.mxu0 %v1392
    %1729 = vmatpush1.msra.mxu0 %v1391
    %1730 = vmatprep.subr.mxu0 %v1390
    %1731 = vmatpush1.msra.mxu0 %v1389
    %1732 = vmatprep.subr.mxu0 0.0
    %1733 = vmatpush2.msra.mxu0 0.0
    %1734 = vmatprep.subr.mxu0 0.0
    %1735 = vmatpush2.msra.mxu0 0.0
    %1736 = vmatprep.subr.mxu0 0.0
    %1737 = vmatpush2.msra.mxu0 0.0
    %1738 = vmatprep.subr.mxu0 0.0
    %1739 = vmatpush2.msra.mxu0 0.0
    %1740 = vmatprep.subr.mxu0 0.0
    %1741 = vmatpush2.msra.mxu0 0.0
    %1742 = vmatprep.subr.mxu0 0.0
    %1743 = vmatpush2.msra.mxu0 0.0
    %1744 = vmatprep.subr.mxu0 0.0
    %1745 = vmatpush2.msra.mxu0 0.0
    %1746 = vmatprep.subr.mxu0 0.0
    %1747 = vmatpush2.msra.mxu0 0.0
    %1748 = vmatprep.subr.mxu0 0.0
    %1749 = vmatpush2.msra.mxu0 0.0
    %1750 = vmatprep.subr.mxu0 0.0
    %1751 = vmatpush2.msra.mxu0 0.0
    %1752 = vmatprep.subr.mxu0 0.0
    %1753 = vmatpush2.msra.mxu0 0.0
    %1754 = vmatprep.subr.mxu0 0.0
    %1755 = vmatpush2.msra.mxu0 0.0
    %1756 = vmatprep.subr.mxu0 0.0
    %1757 = vmatpush2.msra.mxu0 0.0
    %1758 = vmatprep.subr.mxu0 0.0
    %1759 = vmatpush2.msra.mxu0 0.0
    %1760 = vmatprep.subr.mxu0 0.0
    %1761 = vmatpush2.msra.mxu0 0.0
    %1762 = vmatprep.subr.mxu0 0.0
    %1763 = vmatpush2.msra.mxu0 0.0
    %1764 = vmatprep.mubr.f32.mxu0 0.0
    %1765 = vmatmul.mubr.f32.gmra.mxu0 %v1698
    %v1766 = vpop.f32.mrf.mxu0
    %v1767 = vadd.f32 0.0, %v1766
    %v1768 = vpop.f32.mrf.mxu0
    %v1769 = vadd.f32 0.0, %v1768
    %1770 = vdwg.mxu0
    %v1771 = vadd.f32 %v1379, %v1767
    %v1772 = vxor.u32 %v1771, 2147483648
    %v1773 = vmul.f32 %v1772, 1.442695
    %v1774 = vpow.pop %v1773
    %v1775 = vadd.f32 %v1774, 1.0
    %v1776 = vrcp.pop %v1775
    %v1777 = vmul.f32 1.0, %v1776
    %v1778 = vadd.f32 %v1769, %v1410
    %v1779 = vmul.f32 %v1777, %v1778
    %v1780 = vadd.f32 %v1380, %v1779
    %v1781 = vtanh.pop %v1780
    %v1782 = vsub.f32 %v1696, %v1781
    %1784 = vrot.lane.b32.xlu0 %v1782, 64
    %v1785 = vpop.permute.xlu0 %1784
    %v1787 = vmul.f32 %v1777, %v1785
    %1789 = vrot.lane.b32.xlu0 %v1787, 64
    %v1790 = vpop.permute.xlu0 %1789
    %v1792 = vadd.f32 %v1781, %v1790
    %v1794 = vsel %vm254, %v1792, 0
    %1796 = vmatprep.subr.mxu0 0.0
    %1797 = vmatpush1.msra.mxu0 0.0
    %1798 = vmatprep.subr.mxu0 0.0
    %1799 = vmatpush1.msra.mxu0 0.0
    %1800 = vmatprep.subr.mxu0 0.0
    %1801 = vmatpush1.msra.mxu0 0.0
    %1802 = vmatprep.subr.mxu0 0.0
    %1803 = vmatpush1.msra.mxu0 0.0
    %1804 = vmatprep.subr.mxu0 0.0
    %1805 = vmatpush1.msra.mxu0 0.0
    %1806 = vmatprep.subr.mxu0 0.0
    %1807 = vmatpush1.msra.mxu0 0.0
    %1808 = vmatprep.subr.mxu0 0.0
    %1809 = vmatpush1.msra.mxu0 0.0
    %1810 = vmatprep.subr.mxu0 0.0
    %1811 = vmatpush1.msra.mxu0 0.0
    %1812 = vmatprep.subr.mxu0 %v1404
    %1813 = vmatpush1.msra.mxu0 %v1403
    %1814 = vmatprep.subr.mxu0 %v1402
    %1815 = vmatpush1.msra.mxu0 %v1401
    %1816 = vmatprep.subr.mxu0 %v1400
    %1817 = vmatpush1.msra.mxu0 %v1399
    %1818 = vmatprep.subr.mxu0 %v1398
    %1819 = vmatpush1.msra.mxu0 %v1397
    %1820 = vmatprep.subr.mxu0 %v1396
    %1821 = vmatpush1.msra.mxu0 %v1395
    %1822 = vmatprep.subr.mxu0 %v1394
    %1823 = vmatpush1.msra.mxu0 %v1393
    %1824 = vmatprep.subr.mxu0 %v1392
    %1825 = vmatpush1.msra.mxu0 %v1391
    %1826 = vmatprep.subr.mxu0 %v1390
    %1827 = vmatpush1.msra.mxu0 %v1389
    %1828 = vmatprep.subr.mxu0 0.0
    %1829 = vmatpush2.msra.mxu0 0.0
    %1830 = vmatprep.subr.mxu0 0.0
    %1831 = vmatpush2.msra.mxu0 0.0
    %1832 = vmatprep.subr.mxu0 0.0
    %1833 = vmatpush2.msra.mxu0 0.0
    %1834 = vmatprep.subr.mxu0 0.0
    %1835 = vmatpush2.msra.mxu0 0.0
    %1836 = vmatprep.subr.mxu0 0.0
    %1837 = vmatpush2.msra.mxu0 0.0
    %1838 = vmatprep.subr.mxu0 0.0
    %1839 = vmatpush2.msra.mxu0 0.0
    %1840 = vmatprep.subr.mxu0 0.0
    %1841 = vmatpush2.msra.mxu0 0.0
    %1842 = vmatprep.subr.mxu0 0.0
    %1843 = vmatpush2.msra.mxu0 0.0
    %1844 = vmatprep.subr.mxu0 0.0
    %1845 = vmatpush2.msra.mxu0 0.0
    %1846 = vmatprep.subr.mxu0 0.0
    %1847 = vmatpush2.msra.mxu0 0.0
    %1848 = vmatprep.subr.mxu0 0.0
    %1849 = vmatpush2.msra.mxu0 0.0
    %1850 = vmatprep.subr.mxu0 0.0
    %1851 = vmatpush2.msra.mxu0 0.0
    %1852 = vmatprep.subr.mxu0 0.0
    %1853 = vmatpush2.msra.mxu0 0.0
    %1854 = vmatprep.subr.mxu0 0.0
    %1855 = vmatpush2.msra.mxu0 0.0
    %1856 = vmatprep.subr.mxu0 0.0
    %1857 = vmatpush2.msra.mxu0 0.0
    %1858 = vmatprep.subr.mxu0 0.0
    %1859 = vmatpush2.msra.mxu0 0.0
    %1860 = vmatprep.mubr.f32.mxu0 0.0
    %1861 = vmatmul.mubr.f32.gmra.mxu0 %v1794
    %v1862 = vpop.f32.mrf.mxu0
    %v1863 = vadd.f32 0.0, %v1862
    %v1864 = vpop.f32.mrf.mxu0
    %v1865 = vadd.f32 0.0, %v1864
    %1866 = vdwg.mxu0
    %v1867 = vadd.f32 %v1381, %v1863
    %v1868 = vxor.u32 %v1867, 2147483648
    %v1869 = vmul.f32 %v1868, 1.442695
    %v1870 = vpow.pop %v1869
    %v1871 = vadd.f32 %v1870, 1.0
    %v1872 = vrcp.pop %v1871
    %v1873 = vmul.f32 1.0, %v1872
    %v1874 = vadd.f32 %v1865, %v1410
    %v1875 = vmul.f32 %v1873, %v1874
    %v1876 = vadd.f32 %v1382, %v1875
    %v1877 = vtanh.pop %v1876
    %v1878 = vsub.f32 %v1792, %v1877
    %1880 = vrot.lane.b32.xlu0 %v1878, 64
    %v1881 = vpop.permute.xlu0 %1880
    %v1883 = vmul.f32 %v1873, %v1881
    %1885 = vrot.lane.b32.xlu0 %v1883, 64
    %v1886 = vpop.permute.xlu0 %1885
    %v1888 = vadd.f32 %v1877, %v1886
    %v1890 = vsel %vm254, %v1888, 0
    %1892 = vmatprep.subr.mxu0 0.0
    %1893 = vmatpush1.msra.mxu0 0.0
    %1894 = vmatprep.subr.mxu0 0.0
    %1895 = vmatpush1.msra.mxu0 0.0
    %1896 = vmatprep.subr.mxu0 0.0
    %1897 = vmatpush1.msra.mxu0 0.0
    %1898 = vmatprep.subr.mxu0 0.0
    %1899 = vmatpush1.msra.mxu0 0.0
    %1900 = vmatprep.subr.mxu0 0.0
    %1901 = vmatpush1.msra.mxu0 0.0
    %1902 = vmatprep.subr.mxu0 0.0
    %1903 = vmatpush1.msra.mxu0 0.0
    %1904 = vmatprep.subr.mxu0 0.0
    %1905 = vmatpush1.msra.mxu0 0.0
    %1906 = vmatprep.subr.mxu0 0.0
    %1907 = vmatpush1.msra.mxu0 0.0
    %1908 = vmatprep.subr.mxu0 %v1404
    %1909 = vmatpush1.msra.mxu0 %v1403
    %1910 = vmatprep.subr.mxu0 %v1402
    %1911 = vmatpush1.msra.mxu0 %v1401
    %1912 = vmatprep.subr.mxu0 %v1400
    %1913 = vmatpush1.msra.mxu0 %v1399
    %1914 = vmatprep.subr.mxu0 %v1398
    %1915 = vmatpush1.msra.mxu0 %v1397
    %1916 = vmatprep.subr.mxu0 %v1396
    %1917 = vmatpush1.msra.mxu0 %v1395
    %1918 = vmatprep.subr.mxu0 %v1394
    %1919 = vmatpush1.msra.mxu0 %v1393
    %1920 = vmatprep.subr.mxu0 %v1392
    %1921 = vmatpush1.msra.mxu0 %v1391
    %1922 = vmatprep.subr.mxu0 %v1390
    %1923 = vmatpush1.msra.mxu0 %v1389
    %1924 = vmatprep.subr.mxu0 0.0
    %1925 = vmatpush2.msra.mxu0 0.0
    %1926 = vmatprep.subr.mxu0 0.0
    %1927 = vmatpush2.msra.mxu0 0.0
    %1928 = vmatprep.subr.mxu0 0.0
    %1929 = vmatpush2.msra.mxu0 0.0
    %1930 = vmatprep.subr.mxu0 0.0
    %1931 = vmatpush2.msra.mxu0 0.0
    %1932 = vmatprep.subr.mxu0 0.0
    %1933 = vmatpush2.msra.mxu0 0.0
    %1934 = vmatprep.subr.mxu0 0.0
    %1935 = vmatpush2.msra.mxu0 0.0
    %1936 = vmatprep.subr.mxu0 0.0
    %1937 = vmatpush2.msra.mxu0 0.0
    %1938 = vmatprep.subr.mxu0 0.0
    %1939 = vmatpush2.msra.mxu0 0.0
    %1940 = vmatprep.subr.mxu0 0.0
    %1941 = vmatpush2.msra.mxu0 0.0
    %1942 = vmatprep.subr.mxu0 0.0
    %1943 = vmatpush2.msra.mxu0 0.0
    %1944 = vmatprep.subr.mxu0 0.0
    %1945 = vmatpush2.msra.mxu0 0.0
    %1946 = vmatprep.subr.mxu0 0.0
    %1947 = vmatpush2.msra.mxu0 0.0
    %1948 = vmatprep.subr.mxu0 0.0
    %1949 = vmatpush2.msra.mxu0 0.0
    %1950 = vmatprep.subr.mxu0 0.0
    %1951 = vmatpush2.msra.mxu0 0.0
    %1952 = vmatprep.subr.mxu0 0.0
    %1953 = vmatpush2.msra.mxu0 0.0
    %1954 = vmatprep.subr.mxu0 0.0
    %1955 = vmatpush2.msra.mxu0 0.0
    %1956 = vmatprep.mubr.f32.mxu0 0.0
    %1957 = vmatmul.mubr.f32.gmra.mxu0 %v1890
    %v1958 = vpop.f32.mrf.mxu0
    %v1959 = vadd.f32 0.0, %v1958
    %v1960 = vpop.f32.mrf.mxu0
    %v1961 = vadd.f32 0.0, %v1960
    %1962 = vdwg.mxu0
    %v1963 = vadd.f32 %v1383, %v1959
    %v1964 = vxor.u32 %v1963, 2147483648
    %v1965 = vmul.f32 %v1964, 1.442695
    %v1966 = vpow.pop %v1965
    %v1967 = vadd.f32 %v1966, 1.0
    %v1968 = vrcp.pop %v1967
    %v1969 = vmul.f32 1.0, %v1968
    %v1970 = vadd.f32 %v1961, %v1410
    %v1971 = vmul.f32 %v1969, %v1970
    %v1972 = vadd.f32 %v1384, %v1971
    %v1973 = vtanh.pop %v1972
    %v1974 = vsub.f32 %v1888, %v1973
    %1976 = vrot.lane.b32.xlu0 %v1974, 64
    %v1977 = vpop.permute.xlu0 %1976
    %v1979 = vmul.f32 %v1969, %v1977
    %1981 = vrot.lane.b32.xlu0 %v1979, 64
    %v1982 = vpop.permute.xlu0 %1981
    %v1984 = vadd.f32 %v1973, %v1982
    %v1986 = vsel %vm254, %v1984, 0
    %1988 = vmatprep.subr.mxu0 0.0
    %1989 = vmatpush1.msra.mxu0 0.0
    %1990 = vmatprep.subr.mxu0 0.0
    %1991 = vmatpush1.msra.mxu0 0.0
    %1992 = vmatprep.subr.mxu0 0.0
    %1993 = vmatpush1.msra.mxu0 0.0
    %1994 = vmatprep.subr.mxu0 0.0
    %1995 = vmatpush1.msra.mxu0 0.0
    %1996 = vmatprep.subr.mxu0 0.0
    %1997 = vmatpush1.msra.mxu0 0.0
    %1998 = vmatprep.subr.mxu0 0.0
    %1999 = vmatpush1.msra.mxu0 0.0
    %2000 = vmatprep.subr.mxu0 0.0
    %2001 = vmatpush1.msra.mxu0 0.0
    %2002 = vmatprep.subr.mxu0 0.0
    %2003 = vmatpush1.msra.mxu0 0.0
    %2004 = vmatprep.subr.mxu0 %v1404
    %2005 = vmatpush1.msra.mxu0 %v1403
    %2006 = vmatprep.subr.mxu0 %v1402
    %2007 = vmatpush1.msra.mxu0 %v1401
    %2008 = vmatprep.subr.mxu0 %v1400
    %2009 = vmatpush1.msra.mxu0 %v1399
    %2010 = vmatprep.subr.mxu0 %v1398
    %2011 = vmatpush1.msra.mxu0 %v1397
    %2012 = vmatprep.subr.mxu0 %v1396
    %2013 = vmatpush1.msra.mxu0 %v1395
    %2014 = vmatprep.subr.mxu0 %v1394
    %2015 = vmatpush1.msra.mxu0 %v1393
    %2016 = vmatprep.subr.mxu0 %v1392
    %2017 = vmatpush1.msra.mxu0 %v1391
    %2018 = vmatprep.subr.mxu0 %v1390
    %2019 = vmatpush1.msra.mxu0 %v1389
    %2020 = vmatprep.subr.mxu0 0.0
    %2021 = vmatpush2.msra.mxu0 0.0
    %2022 = vmatprep.subr.mxu0 0.0
    %2023 = vmatpush2.msra.mxu0 0.0
    %2024 = vmatprep.subr.mxu0 0.0
    %2025 = vmatpush2.msra.mxu0 0.0
    %2026 = vmatprep.subr.mxu0 0.0
    %2027 = vmatpush2.msra.mxu0 0.0
    %2028 = vmatprep.subr.mxu0 0.0
    %2029 = vmatpush2.msra.mxu0 0.0
    %2030 = vmatprep.subr.mxu0 0.0
    %2031 = vmatpush2.msra.mxu0 0.0
    %2032 = vmatprep.subr.mxu0 0.0
    %2033 = vmatpush2.msra.mxu0 0.0
    %2034 = vmatprep.subr.mxu0 0.0
    %2035 = vmatpush2.msra.mxu0 0.0
    %2036 = vmatprep.subr.mxu0 0.0
    %2037 = vmatpush2.msra.mxu0 0.0
    %2038 = vmatprep.subr.mxu0 0.0
    %2039 = vmatpush2.msra.mxu0 0.0
    %2040 = vmatprep.subr.mxu0 0.0
    %2041 = vmatpush2.msra.mxu0 0.0
    %2042 = vmatprep.subr.mxu0 0.0
    %2043 = vmatpush2.msra.mxu0 0.0
    %2044 = vmatprep.subr.mxu0 0.0
    %2045 = vmatpush2.msra.mxu0 0.0
    %2046 = vmatprep.subr.mxu0 0.0
    %2047 = vmatpush2.msra.mxu0 0.0
    %2048 = vmatprep.subr.mxu0 0.0
    %2049 = vmatpush2.msra.mxu0 0.0
    %2050 = vmatprep.subr.mxu0 0.0
    %2051 = vmatpush2.msra.mxu0 0.0
    %2052 = vmatprep.mubr.f32.mxu0 0.0
    %2053 = vmatmul.mubr.f32.gmra.mxu0 %v1986
    %v2054 = vpop.f32.mrf.mxu0
    %v2055 = vadd.f32 0.0, %v2054
    %v2056 = vpop.f32.mrf.mxu0
    %v2057 = vadd.f32 0.0, %v2056
    %2058 = vdwg.mxu0
    %v2059 = vadd.f32 %v1385, %v2055
    %v2060 = vxor.u32 %v2059, 2147483648
    %v2061 = vmul.f32 %v2060, 1.442695
    %v2062 = vpow.pop %v2061
    %v2063 = vadd.f32 %v2062, 1.0
    %v2064 = vrcp.pop %v2063
    %v2065 = vmul.f32 1.0, %v2064
    %v2066 = vadd.f32 %v2057, %v1410
    %v2067 = vmul.f32 %v2065, %v2066
    %v2068 = vadd.f32 %v1386, %v2067
    %v2069 = vtanh.pop %v2068
    %v2070 = vsub.f32 %v1984, %v2069
    %2072 = vrot.lane.b32.xlu0 %v2070, 64
    %v2073 = vpop.permute.xlu0 %2072
    %v2075 = vmul.f32 %v2065, %v2073
    %2077 = vrot.lane.b32.xlu0 %v2075, 64
    %v2078 = vpop.permute.xlu0 %2077
    %v2080 = vadd.f32 %v2069, %v2078
    %v2082 = vsel %vm254, %v2080, 0
    %2084 = vmatprep.subr.mxu0 0.0
    %2085 = vmatpush1.msra.mxu0 0.0
    %2086 = vmatprep.subr.mxu0 0.0
    %2087 = vmatpush1.msra.mxu0 0.0
    %2088 = vmatprep.subr.mxu0 0.0
    %2089 = vmatpush1.msra.mxu0 0.0
    %2090 = vmatprep.subr.mxu0 0.0
    %2091 = vmatpush1.msra.mxu0 0.0
    %2092 = vmatprep.subr.mxu0 0.0
    %2093 = vmatpush1.msra.mxu0 0.0
    %2094 = vmatprep.subr.mxu0 0.0
    %2095 = vmatpush1.msra.mxu0 0.0
    %2096 = vmatprep.subr.mxu0 0.0
    %2097 = vmatpush1.msra.mxu0 0.0
    %2098 = vmatprep.subr.mxu0 0.0
    %2099 = vmatpush1.msra.mxu0 0.0
    %2100 = vmatprep.subr.mxu0 %v1404
    %2101 = vmatpush1.msra.mxu0 %v1403
    %2102 = vmatprep.subr.mxu0 %v1402
    %2103 = vmatpush1.msra.mxu0 %v1401
    %2104 = vmatprep.subr.mxu0 %v1400
    %2105 = vmatpush1.msra.mxu0 %v1399
    %2106 = vmatprep.subr.mxu0 %v1398
    %2107 = vmatpush1.msra.mxu0 %v1397
    %2108 = vmatprep.subr.mxu0 %v1396
    %2109 = vmatpush1.msra.mxu0 %v1395
    %2110 = vmatprep.subr.mxu0 %v1394
    %2111 = vmatpush1.msra.mxu0 %v1393
    %2112 = vmatprep.subr.mxu0 %v1392
    %2113 = vmatpush1.msra.mxu0 %v1391
    %2114 = vmatprep.subr.mxu0 %v1390
    %2115 = vmatpush1.msra.mxu0 %v1389
    %2116 = vmatprep.subr.mxu0 0.0
    %2117 = vmatpush2.msra.mxu0 0.0
    %2118 = vmatprep.subr.mxu0 0.0
    %2119 = vmatpush2.msra.mxu0 0.0
    %2120 = vmatprep.subr.mxu0 0.0
    %2121 = vmatpush2.msra.mxu0 0.0
    %2122 = vmatprep.subr.mxu0 0.0
    %2123 = vmatpush2.msra.mxu0 0.0
    %2124 = vmatprep.subr.mxu0 0.0
    %2125 = vmatpush2.msra.mxu0 0.0
    %2126 = vmatprep.subr.mxu0 0.0
    %2127 = vmatpush2.msra.mxu0 0.0
    %2128 = vmatprep.subr.mxu0 0.0
    %2129 = vmatpush2.msra.mxu0 0.0
    %2130 = vmatprep.subr.mxu0 0.0
    %2131 = vmatpush2.msra.mxu0 0.0
    %2132 = vmatprep.subr.mxu0 0.0
    %2133 = vmatpush2.msra.mxu0 0.0
    %2134 = vmatprep.subr.mxu0 0.0
    %2135 = vmatpush2.msra.mxu0 0.0
    %2136 = vmatprep.subr.mxu0 0.0
    %2137 = vmatpush2.msra.mxu0 0.0
    %2138 = vmatprep.subr.mxu0 0.0
    %2139 = vmatpush2.msra.mxu0 0.0
    %2140 = vmatprep.subr.mxu0 0.0
    %2141 = vmatpush2.msra.mxu0 0.0
    %2142 = vmatprep.subr.mxu0 0.0
    %2143 = vmatpush2.msra.mxu0 0.0
    %2144 = vmatprep.subr.mxu0 0.0
    %2145 = vmatpush2.msra.mxu0 0.0
    %2146 = vmatprep.subr.mxu0 0.0
    %2147 = vmatpush2.msra.mxu0 0.0
    %2148 = vmatprep.mubr.f32.mxu0 0.0
    %2149 = vmatmul.mubr.f32.gmra.mxu0 %v2082
    %v2150 = vpop.f32.mrf.mxu0
    %v2151 = vadd.f32 0.0, %v2150
    %v2152 = vpop.f32.mrf.mxu0
    %v2153 = vadd.f32 0.0, %v2152
    %2154 = vdwg.mxu0
    %v2155 = vadd.f32 %v1387, %v2151
    %v2156 = vxor.u32 %v2155, 2147483648
    %v2157 = vmul.f32 %v2156, 1.442695
    %v2158 = vpow.pop %v2157
    %v2159 = vadd.f32 %v2158, 1.0
    %v2160 = vrcp.pop %v2159
    %v2161 = vmul.f32 1.0, %v2160
    %v2162 = vadd.f32 %v2153, %v1410
    %v2163 = vmul.f32 %v2161, %v2162
    %v2164 = vadd.f32 %v1388, %v2163
    %v2165 = vtanh.pop %v2164
    %v2166 = vsub.f32 %v2080, %v2165
    %2168 = vrot.lane.b32.xlu0 %v2166, 64
    %v2169 = vpop.permute.xlu0 %2168
    %v2171 = vmul.f32 %v2161, %v2169
    %2173 = vrot.lane.b32.xlu0 %v2171, 64
    %v2174 = vpop.permute.xlu0 %2173
    %v2176 = vadd.f32 %v2165, %v2174
    %v2177 = vld [vmem:[%s10] sm:$0x1]
    %v2179 = vlaneseq
    %v2180 = vshrl.u32 %v2179, 7
    %v2181 = vsub.s32 0, %v2180
    %v2182 = vrot.slane %v2177, %v2181
    %v2184 = vmul.f32 %v2176, %v2182
    %v2185 = vsel %vm254, %v2184, 0.0
    %2186 = vadd.xlane.f32.xlu0 %v2185
    %v2187 = vpop.xlane.xlu0 %2186
    %v2188 = vld [vmem:[#allocation4] sm:$0x1]
    %v2190 = vlaneseq
    %v2191 = vshrl.u32 %v2190, 7
    %v2192 = vsub.s32 0, %v2191
    %v2193 = vrot.slane %v2188, %v2192
    %v2195 = vadd.f32 %v2187, %v2193
    %2197 = vset.pattern.permute.xlu0 0
    %2198 = vperm.xlu0 %2197, %v2195
    %v2199 = vpop.permute.xlu0 %2198
    %2201 = vst [vmem:[%s12] sm:$0xff] %v2199
    // Predicated region
    $region58: #{discriminator_forward.1} parent=1 // pred_check
      _
    $region59: #{discriminator_forward.1} parent=1 // pred_check_branch
      %2203 = sbr.rel (0) target = $region61
    $region60: #{discriminator_forward.1} parent=1 // pred_region
      _
    $region61: #{discriminator_forward.1} parent=1 // pred_fallthru
      _
    // Predicated region
    $region62: #{discriminator_forward.1} parent=1 // pred_check
      _
    $region63: #{discriminator_forward.1} parent=1 // pred_check_branch
      %2205 = sbr.rel (0) target = $region65
    $region64: #{discriminator_forward.1} parent=1 // pred_region
      _
    $region65: #{discriminator_forward.1} parent=1 // pred_fallthru
      _
    %2206 = vsyncpa [#allocation6], 1
    %2207 = vsyncpa [#allocation8], 1

</llo_original>
